<compile_context>
chip_gen: v6e
topology: v6e:2x2x1
jax: 0.10.0
libtpu: 0.0.40
codegen_flags: <defaults>
</compile_context>

<pallas_src>
import math

import jax
import jax.numpy as jnp
from jax.experimental import pallas as pl
from jax.experimental.pallas import tpu as pltpu

MID = 128          # mid_channel in the PyTorch module
HALO = 8           # zero halo on each side of W (>= max pad 3; multiple of 8)


def _round_up(x, m):
    return ((x + m - 1) // m) * m


# ----------------------------------------------------------------------------
# Pallas kernel
# ----------------------------------------------------------------------------
def _dilated_conv_matmul(buf, w_taps, b_ref, k, dilation, w_len, m):
    """Per-tap MXU accumulation: sum_t tap_t @ W_t + bias  ->  (M, Cout) f32.

    buf is a zero-haloed (TB, Wp, MID) bf16 scratch; each tap is a 128-lane
    aligned static slice, so no lane-axis concat is ever materialized.
    """
    pad = dilation * (k - 1) // 2
    acc = None
    for t in range(k):                                  # k == 3, static unroll
        start = HALO - pad + t * dilation               # halo rows supply zeros
        tap = buf[:, pl.ds(start, w_len), :].reshape(m, MID)
        y = jnp.dot(tap, w_taps[t], preferred_element_type=jnp.float32)
        acc = y if acc is None else acc + y
    return acc + b_ref[...]


def _tdnn_kernel(xcol_ref,
                 w1, b1, w2, b2, w3, b3, w4, b4, w5, b5,
                 o_ref, buf):
    tb, w_len, cout = o_ref.shape
    m = tb * w_len

    # Zero ONLY the two halo strips (interior is fully rewritten by conv1).
    zeros_halo = jnp.zeros((tb, HALO, MID), buf.dtype)
    buf[:, pl.ds(0, HALO), :] = zeros_halo
    buf[:, pl.ds(HALO + w_len, HALO), :] = zeros_halo

    # conv1: k=5, d=1, pad=2 — single matmul on the wrapper-built im2col.
    xcol = xcol_ref[...].reshape(m, xcol_ref.shape[-1])
    h = jnp.dot(xcol, w1[...], preferred_element_type=jnp.float32) + b1[...]
    h = jnp.maximum(h, 0.0)
    buf[:, pl.ds(HALO, w_len), :] = h.reshape(tb, w_len, MID).astype(buf.dtype)

    # conv2: k=3, d=2, pad=2 — per-tap accumulation.
    h = jnp.maximum(_dilated_conv_matmul(buf, w2, b2, 3, 2, w_len, m), 0.0)
    buf[:, pl.ds(HALO, w_len), :] = h.reshape(tb, w_len, MID).astype(buf.dtype)

    # conv3: k=3, d=3, pad=3 — per-tap accumulation.
    h = jnp.maximum(_dilated_conv_matmul(buf, w3, b3, 3, 3, w_len, m), 0.0)

    # conv4: pointwise + ReLU.
    h = jnp.maximum(
        jnp.dot(h.astype(jnp.bfloat16), w4[...],
                preferred_element_type=jnp.float32) + b4[...], 0.0)
    # conv5: pointwise, no ReLU.
    h = jnp.dot(h.astype(jnp.bfloat16), w5[...],
                preferred_element_type=jnp.float32) + b5[...]

    o_ref[...] = h.reshape(tb, w_len, cout)


# ----------------------------------------------------------------------------
# Wrapper (layout plumbing + pallas_call)
# ----------------------------------------------------------------------------
def _choose_batch_tile(batch, w_len, target_rows=1024, m_align=256):
    """Pick TB so TB*W ~ target_rows and is a multiple of the MXU M tile
    (256 covers v6e/v7x and is also a multiple of v5e's 128).  When the whole
    batch fits in one step, split into two steps only if each half still fills
    an aligned tile (v7x megacore vs. fat-step tradeoff)."""
    tb_align = max(1, m_align // math.gcd(m_align, max(w_len, 1)))
    cap = max(1, target_rows // max(w_len, 1))
    tb = (cap // tb_align) * tb_align if tb_align <= cap else cap
    if batch <= tb:
        half = -(-batch // 2)
        if half * w_len >= m_align:
            tb = _round_up(half, tb_align)      # >=2 aligned steps
        else:
            tb = batch                          # tiny batch: one fat step
    return max(tb, 1)


def ufeature_tdnn_forward(x, params):
    """x: (B, C, H, W) float32.  params: packed weights from make_params."""
    B, C, H, W = x.shape
    Cin = H * C
    Cout = params["w5"].shape[1]
    assert Cout == Cin, "out_channels must equal H*C for the final reshape"
    KC1 = params["w1"].shape[0]                 # 5*Cin rounded up to 128

    TB = _choose_batch_tile(B, W)
    B_pad = _round_up(B, TB)
    Wp = W + 2 * HALO

    # channels-last: (B, C, H, W) -> (B, W, H*C); zero-pad batch for the grid.
    x_cl = jnp.transpose(x, (0, 3, 2, 1)).reshape(B, W, Cin)
    if B_pad != B:
        x_cl = jnp.pad(x_cl, ((0, B_pad - B), (0, 0), (0, 0)))

    # conv1 im2col (k=5, d=1, pad=2) built once here; K zero-padded to KC1 so
    # the in-kernel contraction is a full multiple of 128 lanes.
    xp = jnp.pad(x_cl, ((0, 0), (2, 2), (0, 0)))
    x_col = jnp.concatenate([xp[:, t:t + W, :] for t in range(5)], axis=-1)
    if KC1 != 5 * Cin:
        x_col = jnp.pad(x_col, ((0, 0), (0, 0), (0, KC1 - 5 * Cin)))
    x_col = x_col.astype(jnp.bfloat16)

    grid = (B_pad // TB,)
    flat = [params[k] for k in
            ("w1", "b1", "w2", "b2", "w3", "b3", "w4", "b4", "w5", "b5")]

    def full_spec(arr):
        nd = arr.ndim
        return pl.BlockSpec(arr.shape, lambda i, _nd=nd: (0,) * _nd)

    out_cl = pl.pallas_call(
        _tdnn_kernel,
        out_shape=jax.ShapeDtypeStruct((B_pad, W, Cout), jnp.float32),
        grid_spec=pltpu.PrefetchScalarGridSpec(
            num_scalar_prefetch=0,
            grid=grid,
            in_specs=[pl.BlockSpec((TB, W, KC1), lambda i: (i, 0, 0))]
                     + [full_spec(a) for a in flat],
            out_specs=pl.BlockSpec((TB, W, Cout), lambda i: (i, 0, 0)),
            scratch_shapes=[pltpu.VMEM((TB, Wp, MID), jnp.bfloat16)],
        ),
        compiler_params=pltpu.CompilerParams(
            dimension_semantics=("parallel",),
            vmem_limit_bytes=32 * 1024 * 1024,   # per-step VMEM is only a few MiB
        ),
    )(x_col, *flat)

    # TODO(synk): if the consumer accepts channels-last (B, W, H, C), drop this
    # transpose — it is a full extra HBM relayout pass on an overhead-bound op.
    out_cl = out_cl[:B]
    return jnp.transpose(out_cl.reshape(B, W, H, C), (0, 3, 2, 1))


# ----------------------------------------------------------------------------
# Deterministic parameter init (PyTorch Conv1d layout: (Cout, Cin, K))
# ----------------------------------------------------------------------------
def make_params(key, in_channels, out_channels):
    shapes = {
        "conv1": (MID, in_channels, 5),
        "conv2": (MID, MID, 3),
        "conv3": (MID, MID, 3),
        "conv4": (MID, MID, 1),
        "conv5": (out_channels, MID, 1),
    }
    torch_params = {}
    for name, shp in shapes.items():
        key, kw, kb = jax.random.split(key, 3)
        torch_params[name + "_w"] = 0.05 * jax.random.normal(kw, shp, jnp.float32)
        torch_params[name + "_b"] = 0.05 * jax.random.normal(kb, (shp[0],), jnp.float32)

    def im2col_w(w, pad_to):               # (Cout, Cin, K) -> (pad_to, Cout) bf16
        cout, cin, k = w.shape
        wt = jnp.transpose(w, (2, 1, 0)).reshape(k * cin, cout)
        if pad_to != k * cin:
            wt = jnp.pad(wt, ((0, pad_to - k * cin), (0, 0)))
        return wt.astype(jnp.bfloat16)

    def tap_w(w):                          # (Cout, Cin, K) -> (K, Cin, Cout) bf16
        return jnp.transpose(w, (2, 1, 0)).astype(jnp.bfloat16)

    kc1 = _round_up(5 * in_channels, 128)
    kernel_params = {
        "w1": im2col_w(torch_params["conv1_w"], kc1),
        "w2": tap_w(torch_params["conv2_w"]),
        "w3": tap_w(torch_params["conv3_w"]),
        "w4": jnp.transpose(torch_params["conv4_w"][:, :, 0]).astype(jnp.bfloat16),
        "w5": jnp.transpose(torch_params["conv5_w"][:, :, 0]).astype(jnp.bfloat16),
    }
    for i in range(1, 6):
        kernel_params[f"b{i}"] = torch_params[f"conv{i}_b"][None, :]   # (1, Cout) f32
    return torch_params, kernel_params


# ----------------------------------------------------------------------------
# Pure-JAX f32 reference (mirrors the PyTorch forward) for verification
# ----------------------------------------------------------------------------
def reference_forward(x, tp):
    def conv1d(h, w, b, dilation, padding):
        out = jax.lax.conv_general_dilated(
            h, w, window_strides=(1,), padding=[(padding, padding)],
            rhs_dilation=(dilation,), dimension_numbers=("NCH", "OIH", "NCH"))
        return out + b[None, :, None]

    B, C, H, W = x.shape
    h = jnp.transpose(x, (0, 2, 1, 3)).reshape(B, H * C, W)
    h = jax.nn.relu(conv1d(h, tp["conv1_w"], tp["conv1_b"], 1, 2))
    h = jax.nn.relu(conv1d(h, tp["conv2_w"], tp["conv2_b"], 2, 2))
    h = jax.nn.relu(conv1d(h, tp["conv3_w"], tp["conv3_b"], 3, 3))
    h = jax.nn.relu(conv1d(h, tp["conv4_w"], tp["conv4_b"], 1, 0))
    h = conv1d(h, tp["conv5_w"], tp["conv5_b"], 1, 0)
    return jnp.transpose(h.reshape(B, H, C, W), (0, 2, 1, 3))


if __name__ == "__main__":
    # x is (B, C, H, W); the module requires in_channels == out_channels == H*C.
    B, C, H, W = 2, 4, 8, 16
    in_channels = out_channels = H * C  # 32

    key = jax.random.PRNGKey(0)
    key, kx = jax.random.split(key)
    x = jax.random.normal(kx, (B, C, H, W), jnp.float32)

    torch_params, kernel_params = make_params(key, in_channels, out_channels)

    out = jax.block_until_ready(ufeature_tdnn_forward(x, kernel_params))
    ref = jax.block_until_ready(reference_forward(x, torch_params))

    assert out.shape == (B, C, H, W)
    # bf16 MXU inputs / bf16 inter-layer scratch vs f32 reference.
    assert jnp.allclose(out, ref, atol=2e-2, rtol=2e-2), (
        f"max abs diff {jnp.max(jnp.abs(out - ref))}")
    print("KERNEL_OK")
</pallas_src>

<mosaic_0001>
module attributes {stable_mosaic.version = 11 : i64} {
  func.func @_tdnn_kernel(%arg0: i32, %arg1: memref<2x16x256xbf16, #tpu.memory_space<vmem>>, %arg2: memref<256x128xbf16, #tpu.memory_space<vmem>>, %arg3: memref<1x128xf32, #tpu.memory_space<vmem>>, %arg4: memref<3x128x128xbf16, #tpu.memory_space<vmem>>, %arg5: memref<1x128xf32, #tpu.memory_space<vmem>>, %arg6: memref<3x128x128xbf16, #tpu.memory_space<vmem>>, %arg7: memref<1x128xf32, #tpu.memory_space<vmem>>, %arg8: memref<128x128xbf16, #tpu.memory_space<vmem>>, %arg9: memref<1x128xf32, #tpu.memory_space<vmem>>, %arg10: memref<128x32xbf16, #tpu.memory_space<vmem>>, %arg11: memref<1x32xf32, #tpu.memory_space<vmem>>, %arg12: memref<2x16x32xf32, #tpu.memory_space<vmem>>, %arg13: memref<2x32x128xbf16, #tpu.memory_space<vmem>>) attributes {dimension_semantics = [#tpu.dimension_semantics<parallel>], iteration_bounds = array<i64: 1>, scalar_prefetch = 0 : i64, scratch_operands = 1 : i64, tpu.core_type = #tpu.core_type<tc>, window_params = [{transform_indices = @transform_0, window_bounds = array<i64: 2, 16, 256>}, {pipeline_mode = #tpu.pipeline_mode<synchronous>, transform_indices = @transform_1, window_bounds = array<i64: 256, 128>}, {pipeline_mode = #tpu.pipeline_mode<synchronous>, transform_indices = @transform_2, window_bounds = array<i64: 1, 128>}, {pipeline_mode = #tpu.pipeline_mode<synchronous>, transform_indices = @transform_3, window_bounds = array<i64: 3, 128, 128>}, {pipeline_mode = #tpu.pipeline_mode<synchronous>, transform_indices = @transform_4, window_bounds = array<i64: 1, 128>}, {pipeline_mode = #tpu.pipeline_mode<synchronous>, transform_indices = @transform_5, window_bounds = array<i64: 3, 128, 128>}, {pipeline_mode = #tpu.pipeline_mode<synchronous>, transform_indices = @transform_6, window_bounds = array<i64: 1, 128>}, {pipeline_mode = #tpu.pipeline_mode<synchronous>, transform_indices = @transform_7, window_bounds = array<i64: 128, 128>}, {pipeline_mode = #tpu.pipeline_mode<synchronous>, transform_indices = @transform_8, window_bounds = array<i64: 1, 128>}, {pipeline_mode = #tpu.pipeline_mode<synchronous>, transform_indices = @transform_9, window_bounds = array<i64: 128, 32>}, {pipeline_mode = #tpu.pipeline_mode<synchronous>, transform_indices = @transform_10, window_bounds = array<i64: 1, 32>}, {transform_indices = @transform_11, window_bounds = array<i64: 2, 16, 32>}]} {
    %cst = arith.constant 0.000000e+00 : bf16
    %0 = vector.broadcast %cst : bf16 to vector<2x8x128xbf16>
    %c0 = arith.constant 0 : index
    %c0_0 = arith.constant 0 : index
    %c0_1 = arith.constant 0 : index
    %1 = vector.load %arg13[%c0, %c0_0, %c0_1] : memref<2x32x128xbf16, #tpu.memory_space<vmem>>, vector<2x8x128xbf16>
    tpu.vector_store %arg13[%c0, %c0_0, %c0_1], %0 {strides = array<i32>} : memref<2x32x128xbf16, #tpu.memory_space<vmem>>, vector<2x8x128xbf16>,
    %c0_2 = arith.constant 0 : index
    %c24 = arith.constant 24 : index
    %c0_3 = arith.constant 0 : index
    %2 = vector.load %arg13[%c0_2, %c24, %c0_3] : memref<2x32x128xbf16, #tpu.memory_space<vmem>>, vector<2x8x128xbf16>
    tpu.vector_store %arg13[%c0_2, %c24, %c0_3], %0 {strides = array<i32>} : memref<2x32x128xbf16, #tpu.memory_space<vmem>>, vector<2x8x128xbf16>,
    %c0_4 = arith.constant 0 : index
    %c0_5 = arith.constant 0 : index
    %c0_6 = arith.constant 0 : index
    %3 = vector.load %arg1[%c0_4, %c0_5, %c0_6] : memref<2x16x256xbf16, #tpu.memory_space<vmem>>, vector<2x16x256xbf16>
    %4 = vector.shape_cast %3 : vector<2x16x256xbf16> to vector<32x256xbf16>
    %c0_7 = arith.constant 0 : index
    %c0_8 = arith.constant 0 : index
    %5 = vector.load %arg2[%c0_7, %c0_8] : memref<256x128xbf16, #tpu.memory_space<vmem>>, vector<256x128xbf16>
    %cst_9 = arith.constant dense<0.000000e+00> : vector<32x128xf32>
    %6 = tpu.matmul %4, %5, %cst_9 {dimension_numbers = #tpu.dot_dimension_numbers<[1], [0], [0], [1], [0, 0, 1, 1], [], []>} : vector<32x256xbf16>, vector<256x128xbf16>, vector<32x128xf32> -> vector<32x128xf32>
    %c0_10 = arith.constant 0 : index
    %c0_11 = arith.constant 0 : index
    %7 = vector.load %arg3[%c0_10, %c0_11] : memref<1x128xf32, #tpu.memory_space<vmem>>, vector<1x128xf32>
    %8 = vector.broadcast %7 : vector<1x128xf32> to vector<32x128xf32>
    %9 = arith.addf %6, %8 : vector<32x128xf32>
    %cst_12 = arith.constant 0.000000e+00 : f32
    %10 = vector.broadcast %cst_12 : f32 to vector<32x128xf32>
    %11 = arith.maximumf %9, %10 : vector<32x128xf32>
    %12 = vector.shape_cast %11 : vector<32x128xf32> to vector<2x16x128xf32>
    %13 = arith.truncf %12 : vector<2x16x128xf32> to vector<2x16x128xbf16>
    %c0_13 = arith.constant 0 : index
    %c8 = arith.constant 8 : index
    %c0_14 = arith.constant 0 : index
    %14 = vector.load %arg13[%c0_13, %c8, %c0_14] : memref<2x32x128xbf16, #tpu.memory_space<vmem>>, vector<2x16x128xbf16>
    tpu.vector_store %arg13[%c0_13, %c8, %c0_14], %13 {strides = array<i32>} : memref<2x32x128xbf16, #tpu.memory_space<vmem>>, vector<2x16x128xbf16>,
    %c0_15 = arith.constant 0 : index
    %c6 = arith.constant 6 : index
    %c0_16 = arith.constant 0 : index
    %15 = vector.load %arg13[%c0_15, %c6, %c0_16] : memref<2x32x128xbf16, #tpu.memory_space<vmem>>, vector<2x16x128xbf16>
    %16 = vector.shape_cast %15 : vector<2x16x128xbf16> to vector<32x128xbf16>
    %c0_17 = arith.constant 0 : index
    %c0_18 = arith.constant 0 : index
    %c0_19 = arith.constant 0 : index
    %17 = vector.load %arg4[%c0_17, %c0_18, %c0_19] : memref<3x128x128xbf16, #tpu.memory_space<vmem>>, vector<1x128x128xbf16>
    %18 = vector.shape_cast %17 : vector<1x128x128xbf16> to vector<128x128xbf16>
    %cst_20 = arith.constant dense<0.000000e+00> : vector<32x128xf32>
    %19 = tpu.matmul %16, %18, %cst_20 {dimension_numbers = #tpu.dot_dimension_numbers<[1], [0], [0], [1], [0, 0, 1, 1], [], []>} : vector<32x128xbf16>, vector<128x128xbf16>, vector<32x128xf32> -> vector<32x128xf32>
    %c0_21 = arith.constant 0 : index
    %c8_22 = arith.constant 8 : index
    %c0_23 = arith.constant 0 : index
    %20 = vector.load %arg13[%c0_21, %c8_22, %c0_23] : memref<2x32x128xbf16, #tpu.memory_space<vmem>>, vector<2x16x128xbf16>
    %21 = vector.shape_cast %20 : vector<2x16x128xbf16> to vector<32x128xbf16>
    %c1 = arith.constant 1 : index
    %c0_24 = arith.constant 0 : index
    %c0_25 = arith.constant 0 : index
    %22 = vector.load %arg4[%c1, %c0_24, %c0_25] : memref<3x128x128xbf16, #tpu.memory_space<vmem>>, vector<1x128x128xbf16>
    %23 = vector.shape_cast %22 : vector<1x128x128xbf16> to vector<128x128xbf16>
    %cst_26 = arith.constant dense<0.000000e+00> : vector<32x128xf32>
    %24 = tpu.matmul %21, %23, %cst_26 {dimension_numbers = #tpu.dot_dimension_numbers<[1], [0], [0], [1], [0, 0, 1, 1], [], []>} : vector<32x128xbf16>, vector<128x128xbf16>, vector<32x128xf32> -> vector<32x128xf32>
    %25 = arith.addf %19, %24 : vector<32x128xf32>
    %c0_27 = arith.constant 0 : index
    %c10 = arith.constant 10 : index
    %c0_28 = arith.constant 0 : index
    %26 = vector.load %arg13[%c0_27, %c10, %c0_28] : memref<2x32x128xbf16, #tpu.memory_space<vmem>>, vector<2x16x128xbf16>
    %27 = vector.shape_cast %26 : vector<2x16x128xbf16> to vector<32x128xbf16>
    %c2 = arith.constant 2 : index
    %c0_29 = arith.constant 0 : index
    %c0_30 = arith.constant 0 : index
    %28 = vector.load %arg4[%c2, %c0_29, %c0_30] : memref<3x128x128xbf16, #tpu.memory_space<vmem>>, vector<1x128x128xbf16>
    %29 = vector.shape_cast %28 : vector<1x128x128xbf16> to vector<128x128xbf16>
    %cst_31 = arith.constant dense<0.000000e+00> : vector<32x128xf32>
    %30 = tpu.matmul %27, %29, %cst_31 {dimension_numbers = #tpu.dot_dimension_numbers<[1], [0], [0], [1], [0, 0, 1, 1], [], []>} : vector<32x128xbf16>, vector<128x128xbf16>, vector<32x128xf32> -> vector<32x128xf32>
    %31 = arith.addf %25, %30 : vector<32x128xf32>
    %c0_32 = arith.constant 0 : index
    %c0_33 = arith.constant 0 : index
    %32 = vector.load %arg5[%c0_32, %c0_33] : memref<1x128xf32, #tpu.memory_space<vmem>>, vector<1x128xf32>
    %33 = vector.broadcast %32 : vector<1x128xf32> to vector<32x128xf32>
    %34 = arith.addf %31, %33 : vector<32x128xf32>
    %cst_34 = arith.constant 0.000000e+00 : f32
    %35 = vector.broadcast %cst_34 : f32 to vector<32x128xf32>
    %36 = arith.maximumf %34, %35 : vector<32x128xf32>
    %37 = vector.shape_cast %36 : vector<32x128xf32> to vector<2x16x128xf32>
    %38 = arith.truncf %37 : vector<2x16x128xf32> to vector<2x16x128xbf16>
    %c0_35 = arith.constant 0 : index
    %c8_36 = arith.constant 8 : index
    %c0_37 = arith.constant 0 : index
    %39 = vector.load %arg13[%c0_35, %c8_36, %c0_37] : memref<2x32x128xbf16, #tpu.memory_space<vmem>>, vector<2x16x128xbf16>
    tpu.vector_store %arg13[%c0_35, %c8_36, %c0_37], %38 {strides = array<i32>} : memref<2x32x128xbf16, #tpu.memory_space<vmem>>, vector<2x16x128xbf16>,
    %c0_38 = arith.constant 0 : index
    %c5 = arith.constant 5 : index
    %c0_39 = arith.constant 0 : index
    %40 = vector.load %arg13[%c0_38, %c5, %c0_39] : memref<2x32x128xbf16, #tpu.memory_space<vmem>>, vector<2x16x128xbf16>
    %41 = vector.shape_cast %40 : vector<2x16x128xbf16> to vector<32x128xbf16>
    %c0_40 = arith.constant 0 : index
    %c0_41 = arith.constant 0 : index
    %c0_42 = arith.constant 0 : index
    %42 = vector.load %arg6[%c0_40, %c0_41, %c0_42] : memref<3x128x128xbf16, #tpu.memory_space<vmem>>, vector<1x128x128xbf16>
    %43 = vector.shape_cast %42 : vector<1x128x128xbf16> to vector<128x128xbf16>
    %cst_43 = arith.constant dense<0.000000e+00> : vector<32x128xf32>
    %44 = tpu.matmul %41, %43, %cst_43 {dimension_numbers = #tpu.dot_dimension_numbers<[1], [0], [0], [1], [0, 0, 1, 1], [], []>} : vector<32x128xbf16>, vector<128x128xbf16>, vector<32x128xf32> -> vector<32x128xf32>
    %c0_44 = arith.constant 0 : index
    %c8_45 = arith.constant 8 : index
    %c0_46 = arith.constant 0 : index
    %45 = vector.load %arg13[%c0_44, %c8_45, %c0_46] : memref<2x32x128xbf16, #tpu.memory_space<vmem>>, vector<2x16x128xbf16>
    %46 = vector.shape_cast %45 : vector<2x16x128xbf16> to vector<32x128xbf16>
    %c1_47 = arith.constant 1 : index
    %c0_48 = arith.constant 0 : index
    %c0_49 = arith.constant 0 : index
    %47 = vector.load %arg6[%c1_47, %c0_48, %c0_49] : memref<3x128x128xbf16, #tpu.memory_space<vmem>>, vector<1x128x128xbf16>
    %48 = vector.shape_cast %47 : vector<1x128x128xbf16> to vector<128x128xbf16>
    %cst_50 = arith.constant dense<0.000000e+00> : vector<32x128xf32>
    %49 = tpu.matmul %46, %48, %cst_50 {dimension_numbers = #tpu.dot_dimension_numbers<[1], [0], [0], [1], [0, 0, 1, 1], [], []>} : vector<32x128xbf16>, vector<128x128xbf16>, vector<32x128xf32> -> vector<32x128xf32>
    %50 = arith.addf %44, %49 : vector<32x128xf32>
    %c0_51 = arith.constant 0 : index
    %c11 = arith.constant 11 : index
    %c0_52 = arith.constant 0 : index
    %51 = vector.load %arg13[%c0_51, %c11, %c0_52] : memref<2x32x128xbf16, #tpu.memory_space<vmem>>, vector<2x16x128xbf16>
    %52 = vector.shape_cast %51 : vector<2x16x128xbf16> to vector<32x128xbf16>
    %c2_53 = arith.constant 2 : index
    %c0_54 = arith.constant 0 : index
    %c0_55 = arith.constant 0 : index
    %53 = vector.load %arg6[%c2_53, %c0_54, %c0_55] : memref<3x128x128xbf16, #tpu.memory_space<vmem>>, vector<1x128x128xbf16>
    %54 = vector.shape_cast %53 : vector<1x128x128xbf16> to vector<128x128xbf16>
    %cst_56 = arith.constant dense<0.000000e+00> : vector<32x128xf32>
    %55 = tpu.matmul %52, %54, %cst_56 {dimension_numbers = #tpu.dot_dimension_numbers<[1], [0], [0], [1], [0, 0, 1, 1], [], []>} : vector<32x128xbf16>, vector<128x128xbf16>, vector<32x128xf32> -> vector<32x128xf32>
    %56 = arith.addf %50, %55 : vector<32x128xf32>
    %c0_57 = arith.constant 0 : index
    %c0_58 = arith.constant 0 : index
    %57 = vector.load %arg7[%c0_57, %c0_58] : memref<1x128xf32, #tpu.memory_space<vmem>>, vector<1x128xf32>
    %58 = vector.broadcast %57 : vector<1x128xf32> to vector<32x128xf32>
    %59 = arith.addf %56, %58 : vector<32x128xf32>
    %cst_59 = arith.constant 0.000000e+00 : f32
    %60 = vector.broadcast %cst_59 : f32 to vector<32x128xf32>
    %61 = arith.maximumf %59, %60 : vector<32x128xf32>
    %62 = arith.truncf %61 : vector<32x128xf32> to vector<32x128xbf16>
    %c0_60 = arith.constant 0 : index
    %c0_61 = arith.constant 0 : index
    %63 = vector.load %arg8[%c0_60, %c0_61] : memref<128x128xbf16, #tpu.memory_space<vmem>>, vector<128x128xbf16>
    %cst_62 = arith.constant dense<0.000000e+00> : vector<32x128xf32>
    %64 = tpu.matmul %62, %63, %cst_62 {dimension_numbers = #tpu.dot_dimension_numbers<[1], [0], [0], [1], [0, 0, 1, 1], [], []>} : vector<32x128xbf16>, vector<128x128xbf16>, vector<32x128xf32> -> vector<32x128xf32>
    %c0_63 = arith.constant 0 : index
    %c0_64 = arith.constant 0 : index
    %65 = vector.load %arg9[%c0_63, %c0_64] : memref<1x128xf32, #tpu.memory_space<vmem>>, vector<1x128xf32>
    %66 = vector.broadcast %65 : vector<1x128xf32> to vector<32x128xf32>
    %67 = arith.addf %64, %66 : vector<32x128xf32>
    %cst_65 = arith.constant 0.000000e+00 : f32
    %68 = vector.broadcast %cst_65 : f32 to vector<32x128xf32>
    %69 = arith.maximumf %67, %68 : vector<32x128xf32>
    %70 = arith.truncf %69 : vector<32x128xf32> to vector<32x128xbf16>
    %c0_66 = arith.constant 0 : index
    %c0_67 = arith.constant 0 : index
    %71 = vector.load %arg10[%c0_66, %c0_67] : memref<128x32xbf16, #tpu.memory_space<vmem>>, vector<128x32xbf16>
    %cst_68 = arith.constant dense<0.000000e+00> : vector<32x32xf32>
    %72 = tpu.matmul %70, %71, %cst_68 {dimension_numbers = #tpu.dot_dimension_numbers<[1], [0], [0], [1], [0, 0, 1, 1], [], []>} : vector<32x128xbf16>, vector<128x32xbf16>, vector<32x32xf32> -> vector<32x32xf32>
    %c0_69 = arith.constant 0 : index
    %c0_70 = arith.constant 0 : index
    %73 = vector.load %arg11[%c0_69, %c0_70] : memref<1x32xf32, #tpu.memory_space<vmem>>, vector<1x32xf32>
    %74 = vector.broadcast %73 : vector<1x32xf32> to vector<32x32xf32>
    %75 = arith.addf %72, %74 : vector<32x32xf32>
    %76 = vector.shape_cast %75 : vector<32x32xf32> to vector<2x16x32xf32>
    %c0_71 = arith.constant 0 : index
    %c0_72 = arith.constant 0 : index
    %c0_73 = arith.constant 0 : index
    %77 = vector.load %arg12[%c0_71, %c0_72, %c0_73] : memref<2x16x32xf32, #tpu.memory_space<vmem>>, vector<2x16x32xf32>
    tpu.vector_store %arg12[%c0_71, %c0_72, %c0_73], %76 {strides = array<i32>} : memref<2x16x32xf32, #tpu.memory_space<vmem>>, vector<2x16x32xf32>,
    return
  }
  func.func @transform_0(%arg0: i32) -> (i32, i32, i32) {
    %c0_i32 = arith.constant 0 : i32
    %c0_i32_0 = arith.constant 0 : i32
    %c0_i32_1 = arith.constant 0 : i32
    return %arg0, %c0_i32, %c0_i32_0 : i32, i32, i32
  }
  func.func @transform_1(%arg0: i32) -> (i32, i32) {
    %c0_i32 = arith.constant 0 : i32
    %c0_i32_0 = arith.constant 0 : i32
    %c0_i32_1 = arith.constant 0 : i32
    return %c0_i32, %c0_i32_0 : i32, i32
  }
  func.func @transform_2(%arg0: i32) -> (i32, i32) {
    %c0_i32 = arith.constant 0 : i32
    %c0_i32_0 = arith.constant 0 : i32
    %c0_i32_1 = arith.constant 0 : i32
    return %c0_i32, %c0_i32_0 : i32, i32
  }
  func.func @transform_3(%arg0: i32) -> (i32, i32, i32) {
    %c0_i32 = arith.constant 0 : i32
    %c0_i32_0 = arith.constant 0 : i32
    %c0_i32_1 = arith.constant 0 : i32
    %c0_i32_2 = arith.constant 0 : i32
    return %c0_i32, %c0_i32_0, %c0_i32_1 : i32, i32, i32
  }
  func.func @transform_4(%arg0: i32) -> (i32, i32) {
    %c0_i32 = arith.constant 0 : i32
    %c0_i32_0 = arith.constant 0 : i32
    %c0_i32_1 = arith.constant 0 : i32
    return %c0_i32, %c0_i32_0 : i32, i32
  }
  func.func @transform_5(%arg0: i32) -> (i32, i32, i32) {
    %c0_i32 = arith.constant 0 : i32
    %c0_i32_0 = arith.constant 0 : i32
    %c0_i32_1 = arith.constant 0 : i32
    %c0_i32_2 = arith.constant 0 : i32
    return %c0_i32, %c0_i32_0, %c0_i32_1 : i32, i32, i32
  }
  func.func @transform_6(%arg0: i32) -> (i32, i32) {
    %c0_i32 = arith.constant 0 : i32
    %c0_i32_0 = arith.constant 0 : i32
    %c0_i32_1 = arith.constant 0 : i32
    return %c0_i32, %c0_i32_0 : i32, i32
  }
  func.func @transform_7(%arg0: i32) -> (i32, i32) {
    %c0_i32 = arith.constant 0 : i32
    %c0_i32_0 = arith.constant 0 : i32
    %c0_i32_1 = arith.constant 0 : i32
    return %c0_i32, %c0_i32_0 : i32, i32
  }
  func.func @transform_8(%arg0: i32) -> (i32, i32) {
    %c0_i32 = arith.constant 0 : i32
    %c0_i32_0 = arith.constant 0 : i32
    %c0_i32_1 = arith.constant 0 : i32
    return %c0_i32, %c0_i32_0 : i32, i32
  }
  func.func @transform_9(%arg0: i32) -> (i32, i32) {
    %c0_i32 = arith.constant 0 : i32
    %c0_i32_0 = arith.constant 0 : i32
    %c0_i32_1 = arith.constant 0 : i32
    return %c0_i32, %c0_i32_0 : i32, i32
  }
  func.func @transform_10(%arg0: i32) -> (i32, i32) {
    %c0_i32 = arith.constant 0 : i32
    %c0_i32_0 = arith.constant 0 : i32
    %c0_i32_1 = arith.constant 0 : i32
    return %c0_i32, %c0_i32_0 : i32, i32
  }
  func.func @transform_11(%arg0: i32) -> (i32, i32, i32) {
    %c0_i32 = arith.constant 0 : i32
    %c0_i32_0 = arith.constant 0 : i32
    %c0_i32_1 = arith.constant 0 : i32
    return %arg0, %c0_i32, %c0_i32_0 : i32, i32, i32
  }
}

</mosaic_0001>

<llo_original>
// kernel: tpu_custom_call.1
$region0: #{tpu_custom_call.1}
  #allocation0 [shape = 'u32[]', space=smem, size = 0x4, offset = 0x4, fixed_abs, tag = 'smem constant byte address 0x4 - core index']
  #allocation1 [shape = 'u32[144,128]{1,0:T(1,128)}', space=vmem, size = 0x12000, scoped, tag = 'internal scratch']
  #allocation2 [shape = 'bf16[2,32,128]{2,1,0:T(8,128)(2,1)}', space=vmem, size = 0x4000, scoped, tag = 'scratch operand']
  %s0 = inlined_call_operand.hbm [shape: bf16[2,16,256], index: 0, kind: input, shape index: {}]
  %s1 = inlined_call_operand.hbm [shape: bf16[256,128], index: 1, kind: input, shape index: {}]
  %s2 = inlined_call_operand.vmem [shape: f32[1,128], index: 2, kind: input, shape index: {}]
  %s3 = inlined_call_operand.hbm [shape: bf16[3,128,128], index: 3, kind: input, shape index: {}]
  %s4 = inlined_call_operand.vmem [shape: f32[1,128], index: 4, kind: input, shape index: {}]
  %s5 = inlined_call_operand.hbm [shape: bf16[3,128,128], index: 5, kind: input, shape index: {}]
  %s6 = inlined_call_operand.vmem [shape: f32[1,128], index: 6, kind: input, shape index: {}]
  %s7 = inlined_call_operand.vmem [shape: bf16[128,128], index: 7, kind: input, shape index: {}]
  %s8 = inlined_call_operand.vmem [shape: f32[1,128], index: 8, kind: input, shape index: {}]
  %s9 = inlined_call_operand.vmem [shape: bf16[128,32], index: 9, kind: input, shape index: {}]
  %s10 = inlined_call_operand.vmem [shape: f32[1,32], index: 10, kind: input, shape index: {}]
  %s11 = inlined_call_operand.hbm [shape: f32[2,16,32], index: 11, kind: output, shape index: {}]
  %s12 = sld [smem:[#allocation0]]
  $region70: #{tpu_custom_call.1} parent=0
    _
  %s14 = ssub.s32 1, %s12
  %s15 = scalar_select 0, %s14, %s12
  $region1: #{tpu_custom_call.1} parent=0
    #allocation3 [shape = 'u8[16384]{0}', space=vmem, size = 0x4000, scoped, tag = 'input window, operand 0, single buffered']
    #allocation4 [shape = 's32[1]{0}', space=sflag, size = 0x4, scoped, tag = 'scoped memory for tpu_custom_call.1']
    #allocation5 [shape = 's32[1]{0}', space=sflag, size = 0x4, scoped, tag = 'scoped memory for tpu_custom_call.1']
    #allocation6 [shape = 'u8[65536]{0}', space=vmem, size = 0x10000, scoped, tag = 'input window, operand 1, single buffered']
    #allocation7 [shape = 's32[1]{0}', space=sflag, size = 0x4, scoped, tag = 'scoped memory for tpu_custom_call.1']
    #allocation8 [shape = 'u8[98304]{0}', space=vmem, size = 0x18000, scoped, tag = 'input window, operand 3, single buffered']
    #allocation9 [shape = 'u8[98304]{0}', space=vmem, size = 0x18000, scoped, tag = 'input window, operand 5, single buffered']
    #allocation10 [shape = 's32[1]{0}', space=sflag, size = 0x4, scoped, tag = 'scoped memory for tpu_custom_call.1']
    #allocation11 [shape = 'u8[16384]{0}', space=vmem, size = 0x4000, scoped, tag = 'output window, operand 0, single buffered']
    %16 = vsyncpa [#allocation4], 0
    %17 = vsyncpa [#allocation7], 0
    %18 = vsyncpa [#allocation10], 0
    %19 = vsyncpa [#allocation5], 0
    // Predicated region
    $region2: #{tpu_custom_call.1} parent=1 // pred_check
      _
    $region3: #{tpu_custom_call.1} parent=1 // pred_check_branch
      %21 = sbr.rel (0) target = $region5
    $region4: #{tpu_custom_call.1} parent=1 // pred_region
      %s23 = ssub.s32 512, 512
      %24 = vsyncadd [#allocation4], %s23
      %s25 = sshll.u32 [#allocation3], 4
      %s26 = int_to_ptr.vmem [resolvable:$true] %s25
      %31 = dma.hbm_to_vmem [thread:$0]  %s0, 512, %s26, [#allocation4], 128, 128, 8
    $region5: #{tpu_custom_call.1} parent=1 // pred_fallthru
      _
    // Predicated region
    $region6: #{tpu_custom_call.1} parent=1 // pred_check
      _
    $region7: #{tpu_custom_call.1} parent=1 // pred_check_branch
      %33 = sbr.rel (0) target = $region9
    $region8: #{tpu_custom_call.1} parent=1 // pred_region
      %s35 = ssub.s32 2048, 2048
      %36 = vsyncadd [#allocation7], %s35
      %s37 = sshll.u32 [#allocation6], 4
      %s38 = int_to_ptr.vmem [resolvable:$true] %s37
      %43 = dma.hbm_to_vmem [thread:$0]  %s1, 2048, %s38, [#allocation7], 64, 64, 4
    $region9: #{tpu_custom_call.1} parent=1 // pred_fallthru
      _
    // Predicated region
    $region10: #{tpu_custom_call.1} parent=1 // pred_check
      _
    $region11: #{tpu_custom_call.1} parent=1 // pred_check_branch
      %45 = sbr.rel (0) target = $region13
    $region12: #{tpu_custom_call.1} parent=1 // pred_region
      _
    $region13: #{tpu_custom_call.1} parent=1 // pred_fallthru
      _
    // Predicated region
    $region14: #{tpu_custom_call.1} parent=1 // pred_check
      _
    $region15: #{tpu_custom_call.1} parent=1 // pred_check_branch
      %47 = sbr.rel (0) target = $region17
    $region16: #{tpu_custom_call.1} parent=1 // pred_region
      %s49 = ssub.s32 3072, 3072
      %50 = vsyncadd [#allocation7], %s49
      %s51 = sshll.u32 [#allocation8], 4
      %s52 = int_to_ptr.vmem [resolvable:$true] %s51
      %57 = dma.hbm_to_vmem [thread:$0]  %s3, 3072, %s52, [#allocation7], 64, 64, 4
    $region17: #{tpu_custom_call.1} parent=1 // pred_fallthru
      _
    // Predicated region
    $region18: #{tpu_custom_call.1} parent=1 // pred_check
      _
    $region19: #{tpu_custom_call.1} parent=1 // pred_check_branch
      %59 = sbr.rel (0) target = $region21
    $region20: #{tpu_custom_call.1} parent=1 // pred_region
      _
    $region21: #{tpu_custom_call.1} parent=1 // pred_fallthru
      _
    // Predicated region
    $region22: #{tpu_custom_call.1} parent=1 // pred_check
      _
    $region23: #{tpu_custom_call.1} parent=1 // pred_check_branch
      %61 = sbr.rel (0) target = $region25
    $region24: #{tpu_custom_call.1} parent=1 // pred_region
      %s63 = ssub.s32 3072, 3072
      %64 = vsyncadd [#allocation10], %s63
      %s65 = sshll.u32 [#allocation9], 4
      %s66 = int_to_ptr.vmem [resolvable:$true] %s65
      %71 = dma.hbm_to_vmem [thread:$0]  %s5, 3072, %s66, [#allocation10], 64, 64, 4
    $region25: #{tpu_custom_call.1} parent=1 // pred_fallthru
      _
    // Predicated region
    $region26: #{tpu_custom_call.1} parent=1 // pred_check
      _
    $region27: #{tpu_custom_call.1} parent=1 // pred_check_branch
      %73 = sbr.rel (0) target = $region29
    $region28: #{tpu_custom_call.1} parent=1 // pred_region
      _
    $region29: #{tpu_custom_call.1} parent=1 // pred_fallthru
      _
    // Predicated region
    $region30: #{tpu_custom_call.1} parent=1 // pred_check
      _
    $region31: #{tpu_custom_call.1} parent=1 // pred_check_branch
      %75 = sbr.rel (0) target = $region33
    $region32: #{tpu_custom_call.1} parent=1 // pred_region
      _
    $region33: #{tpu_custom_call.1} parent=1 // pred_fallthru
      _
    // Predicated region
    $region34: #{tpu_custom_call.1} parent=1 // pred_check
      _
    $region35: #{tpu_custom_call.1} parent=1 // pred_check_branch
      %77 = sbr.rel (0) target = $region37
    $region36: #{tpu_custom_call.1} parent=1 // pred_region
      _
    $region37: #{tpu_custom_call.1} parent=1 // pred_fallthru
      _
    // Predicated region
    $region38: #{tpu_custom_call.1} parent=1 // pred_check
      _
    $region39: #{tpu_custom_call.1} parent=1 // pred_check_branch
      %79 = sbr.rel (0) target = $region41
    $region40: #{tpu_custom_call.1} parent=1 // pred_region
      _
    $region41: #{tpu_custom_call.1} parent=1 // pred_fallthru
      _
    // Predicated region
    $region42: #{tpu_custom_call.1} parent=1 // pred_check
      _
    $region43: #{tpu_custom_call.1} parent=1 // pred_check_branch
      %81 = sbr.rel (0) target = $region45
    $region44: #{tpu_custom_call.1} parent=1 // pred_region
      _
    $region45: #{tpu_custom_call.1} parent=1 // pred_fallthru
      _
    // Predicated region
    $region46: #{tpu_custom_call.1} parent=1 // pred_check
      _
    $region47: #{tpu_custom_call.1} parent=1 // pred_check_branch
      %83 = sbr.rel (0) target = $region49
    $region48: #{tpu_custom_call.1} parent=1 // pred_region
      %84 = dma.done [#allocation4], 512
    $region49: #{tpu_custom_call.1} parent=1 // pred_fallthru
      _
    // Predicated region
    $region50: #{tpu_custom_call.1} parent=1 // pred_check
      _
    $region51: #{tpu_custom_call.1} parent=1 // pred_check_branch
      %86 = sbr.rel (0) target = $region53
    $region52: #{tpu_custom_call.1} parent=1 // pred_region
      %87 = dma.done [#allocation7], 2048
    $region53: #{tpu_custom_call.1} parent=1 // pred_fallthru
      _
    // Predicated region
    $region54: #{tpu_custom_call.1} parent=1 // pred_check
      _
    $region55: #{tpu_custom_call.1} parent=1 // pred_check_branch
      %89 = sbr.rel (0) target = $region57
    $region56: #{tpu_custom_call.1} parent=1 // pred_region
      %90 = dma.done [#allocation7], 3072
    $region57: #{tpu_custom_call.1} parent=1 // pred_fallthru
      _
    // Predicated region
    $region58: #{tpu_custom_call.1} parent=1 // pred_check
      _
    $region59: #{tpu_custom_call.1} parent=1 // pred_check_branch
      %92 = sbr.rel (0) target = $region61
    $region60: #{tpu_custom_call.1} parent=1 // pred_region
      %93 = dma.done [#allocation10], 3072
    $region61: #{tpu_custom_call.1} parent=1 // pred_fallthru
      _
    %95 = vst [vmem:[#allocation2] sm:$0xf] 0
    %96 = vst [vmem:[#allocation2 + $0x10] sm:$0xf] 0
    %97 = vst [vmem:[#allocation2 + $0xc] sm:$0xf] 0
    %98 = vst [vmem:[#allocation2 + $0x1c] sm:$0xf] 0
    %v99 = vld [vmem:[#allocation3] sm:$0xff]
    %v100 = vld [vmem:[#allocation3 + $0x8] sm:$0xff]
    %v101 = vld [vmem:[#allocation3 + $0x10] sm:$0xff]
    %v102 = vld [vmem:[#allocation3 + $0x18] sm:$0xff]
    %v103 = vld [vmem:[#allocation6] sm:$0xf]
    %v104 = vld [vmem:[#allocation6 + $0x4] sm:$0xf]
    %v105 = vld [vmem:[#allocation6 + $0x8] sm:$0xf]
    %v106 = vld [vmem:[#allocation6 + $0xc] sm:$0xf]
    %v107 = vld [vmem:[#allocation6 + $0x10] sm:$0xf]
    %v108 = vld [vmem:[#allocation6 + $0x14] sm:$0xf]
    %v109 = vld [vmem:[#allocation6 + $0x18] sm:$0xf]
    %v110 = vld [vmem:[#allocation6 + $0x1c] sm:$0xf]
    %v111 = vld [vmem:[#allocation6 + $0x20] sm:$0xf]
    %v112 = vld [vmem:[#allocation6 + $0x24] sm:$0xf]
    %v113 = vld [vmem:[#allocation6 + $0x28] sm:$0xf]
    %v114 = vld [vmem:[#allocation6 + $0x2c] sm:$0xf]
    %v115 = vld [vmem:[#allocation6 + $0x30] sm:$0xf]
    %v116 = vld [vmem:[#allocation6 + $0x34] sm:$0xf]
    %v117 = vld [vmem:[#allocation6 + $0x38] sm:$0xf]
    %v118 = vld [vmem:[#allocation6 + $0x3c] sm:$0xf]
    %v119 = vld [vmem:[#allocation6 + $0x40] sm:$0xf]
    %v120 = vld [vmem:[#allocation6 + $0x44] sm:$0xf]
    %v121 = vld [vmem:[#allocation6 + $0x48] sm:$0xf]
    %v122 = vld [vmem:[#allocation6 + $0x4c] sm:$0xf]
    %v123 = vld [vmem:[#allocation6 + $0x50] sm:$0xf]
    %v124 = vld [vmem:[#allocation6 + $0x54] sm:$0xf]
    %v125 = vld [vmem:[#allocation6 + $0x58] sm:$0xf]
    %v126 = vld [vmem:[#allocation6 + $0x5c] sm:$0xf]
    %v127 = vld [vmem:[#allocation6 + $0x60] sm:$0xf]
    %v128 = vld [vmem:[#allocation6 + $0x64] sm:$0xf]
    %v129 = vld [vmem:[#allocation6 + $0x68] sm:$0xf]
    %v130 = vld [vmem:[#allocation6 + $0x6c] sm:$0xf]
    %v131 = vld [vmem:[#allocation6 + $0x70] sm:$0xf]
    %v132 = vld [vmem:[#allocation6 + $0x74] sm:$0xf]
    %v133 = vld [vmem:[#allocation6 + $0x78] sm:$0xf]
    %v134 = vld [vmem:[#allocation6 + $0x7c] sm:$0xf]
    %v135 = vld [vmem:[%s2] sm:$0x1]
    %v137 = vlaneseq
    %v138 = vshrl.u32 %v137, 7
    %v139 = vsub.s32 0, %v138
    %v140 = vrot.slane %v135, %v139
    %v146 = vunpack.c.l.b16 %v99
    %v147 = vunpack.c.h.b16 %v99
    %v148 = vunpack.c.l.b16 %v100
    %v149 = vunpack.c.h.b16 %v100
    %v150 = vunpack.c.l.b16 %v101
    %v151 = vunpack.c.h.b16 %v101
    %v152 = vunpack.c.l.b16 %v102
    %v153 = vunpack.c.h.b16 %v102
    %v154 = vpack.c.b16 %v148, %v146
    %v155 = vpack.c.b16 %v149, %v147
    %v156 = vpack.c.b16 %v152, %v150
    %v157 = vpack.c.b16 %v153, %v151
    %v194 = vunpack.c.l.b16 %v103
    %v195 = vunpack.c.l.b16 %v104
    %v196 = vunpack.c.l.b16 %v105
    %v197 = vunpack.c.l.b16 %v106
    %v198 = vunpack.c.l.b16 %v107
    %v199 = vunpack.c.l.b16 %v108
    %v200 = vunpack.c.l.b16 %v109
    %v201 = vunpack.c.l.b16 %v110
    %v202 = vunpack.c.l.b16 %v111
    %v203 = vunpack.c.l.b16 %v112
    %v204 = vunpack.c.l.b16 %v113
    %v205 = vunpack.c.l.b16 %v114
    %v206 = vunpack.c.l.b16 %v115
    %v207 = vunpack.c.l.b16 %v116
    %v208 = vunpack.c.l.b16 %v117
    %v209 = vunpack.c.l.b16 %v118
    %v210 = vunpack.c.l.b16 %v119
    %v211 = vunpack.c.l.b16 %v120
    %v212 = vunpack.c.l.b16 %v121
    %v213 = vunpack.c.l.b16 %v122
    %v214 = vunpack.c.l.b16 %v123
    %v215 = vunpack.c.l.b16 %v124
    %v216 = vunpack.c.l.b16 %v125
    %v217 = vunpack.c.l.b16 %v126
    %v218 = vunpack.c.l.b16 %v127
    %v219 = vunpack.c.l.b16 %v128
    %v220 = vunpack.c.l.b16 %v129
    %v221 = vunpack.c.l.b16 %v130
    %v222 = vunpack.c.l.b16 %v131
    %v223 = vunpack.c.l.b16 %v132
    %v224 = vunpack.c.l.b16 %v133
    %v225 = vunpack.c.l.b16 %v134
    %v226 = vpack.c.b16 %v195, %v194
    %v227 = vpack.c.b16 %v197, %v196
    %v228 = vpack.c.b16 %v199, %v198
    %v229 = vpack.c.b16 %v201, %v200
    %v230 = vpack.c.b16 %v203, %v202
    %v231 = vpack.c.b16 %v205, %v204
    %v232 = vpack.c.b16 %v207, %v206
    %v233 = vpack.c.b16 %v209, %v208
    %v234 = vpack.c.b16 %v211, %v210
    %v235 = vpack.c.b16 %v213, %v212
    %v236 = vpack.c.b16 %v215, %v214
    %v237 = vpack.c.b16 %v217, %v216
    %v238 = vpack.c.b16 %v219, %v218
    %v239 = vpack.c.b16 %v221, %v220
    %v240 = vpack.c.b16 %v223, %v222
    %v241 = vpack.c.b16 %v225, %v224
    %258 = vmatprep.subr.bf16.mxu0 0
    %259 = vmatpush1.bf16.msra.mxu0 %v233
    %260 = vmatprep.subr.bf16.mxu0 0
    %261 = vmatpush1.bf16.msra.mxu0 %v232
    %262 = vmatprep.subr.bf16.mxu0 0
    %263 = vmatpush1.bf16.msra.mxu0 %v231
    %264 = vmatprep.subr.bf16.mxu0 0
    %265 = vmatpush1.bf16.msra.mxu0 %v230
    %266 = vmatprep.subr.bf16.mxu0 0
    %267 = vmatpush1.bf16.msra.mxu0 %v229
    %268 = vmatprep.subr.bf16.mxu0 0
    %269 = vmatpush1.bf16.msra.mxu0 %v228
    %270 = vmatprep.subr.bf16.mxu0 0
    %271 = vmatpush1.bf16.msra.mxu0 %v227
    %272 = vmatprep.subr.bf16.mxu0 0
    %273 = vmatpush1.bf16.msra.mxu0 %v226
    %274 = vmatprep.subr.bf16.mxu0 0
    %275 = vmatpush2.bf16.msra.mxu0 %v241
    %276 = vmatprep.subr.bf16.mxu0 0
    %277 = vmatpush2.bf16.msra.mxu0 %v240
    %278 = vmatprep.subr.bf16.mxu0 0
    %279 = vmatpush2.bf16.msra.mxu0 %v239
    %280 = vmatprep.subr.bf16.mxu0 0
    %281 = vmatpush2.bf16.msra.mxu0 %v238
    %282 = vmatprep.subr.bf16.mxu0 0
    %283 = vmatpush2.bf16.msra.mxu0 %v237
    %284 = vmatprep.subr.bf16.mxu0 0
    %285 = vmatpush2.bf16.msra.mxu0 %v236
    %286 = vmatprep.subr.bf16.mxu0 0
    %287 = vmatpush2.bf16.msra.mxu0 %v235
    %288 = vmatprep.subr.bf16.mxu0 0
    %289 = vmatpush2.bf16.msra.mxu0 %v234
    %290 = vmatprep.mubr.bf16.mxu0 %v155
    %291 = vmatmul.mubr.bf16.gmra.mxu0 %v154
    %v292 = vpop.f32.mrf.mxu0
    %v293 = vadd.f32 %v140, %v292
    %v294 = vpop.f32.mrf.mxu0
    %v295 = vpop.f32.mrf.mxu0
    %v296 = vadd.f32 %v140, %v295
    %v297 = vpop.f32.mrf.mxu0
    %298 = vmatprep.mubr.bf16.mxu0 %v157
    %299 = vmatmul.mubr.bf16.gmra.mxu0 %v156
    %v300 = vpop.f32.mrf.mxu0
    %v301 = vadd.f32 %v140, %v300
    %v302 = vpop.f32.mrf.mxu0
    %v303 = vpop.f32.mrf.mxu0
    %v304 = vadd.f32 %v140, %v303
    %v305 = vpop.f32.mrf.mxu0
    %306 = vdwg.mxu0
    %v307 = vmax.f32 %v293, 0.0
    %v308 = vmax.f32 %v296, 0.0
    %v309 = vmax.f32 %v301, 0.0
    %v310 = vmax.f32 %v304, 0.0
    %v311 = vpack.c.bf16 %v308, %v307
    %v312 = vpack.c.bf16 %v310, %v309
    %v315 = vunpack.c.l.b16 %v311
    %v316 = vunpack.c.h.b16 %v311
    %v317 = vunpack.c.l.b16 %v312
    %v318 = vunpack.c.h.b16 %v312
    %v319 = vpack.c.b16 %v315, %v315
    %v320 = vpack.c.b16 %v316, %v316
    %v321 = vpack.c.b16 %v317, %v317
    %v322 = vpack.c.b16 %v318, %v318
    %327 = vst [vmem:[#allocation2 + $0x4] sm:$0xf] %v319
    %328 = vst [vmem:[#allocation2 + $0x8] sm:$0xf] %v320
    %329 = vst [vmem:[#allocation2 + $0x14] sm:$0xf] %v321
    %330 = vst [vmem:[#allocation2 + $0x18] sm:$0xf] %v322
    %v331 = vld [vmem:[#allocation2] sm:$0x8]
    %v332 = vld [vmem:[#allocation2 + $0x4] sm:$0xf]
    %v333 = vld [vmem:[#allocation2 + $0x8] sm:$0x7]
    %v334 = vld [vmem:[#allocation2 + $0x10] sm:$0x8]
    %v335 = vld [vmem:[#allocation2 + $0x14] sm:$0xf]
    %v336 = vld [vmem:[#allocation2 + $0x18] sm:$0x7]
    %vm343 = vcmask 1040384
    %vm344 = vcmask 1044484
    %vm345 = vmor %vm343, %vm344
    %v346 = vrot.slane %v331, 7
    %v347 = vrot.slane %v346, 4
    %v348 = vrot.slane %v332, 7
    %v349 = vsel %vm345, %v347, %v348
    %v350 = vrot.slane %v348, 4
    %v351 = vrot.slane %v333, 7
    %v352 = vsel %vm345, %v350, %v351
    %v353 = vrot.slane %v334, 7
    %v354 = vrot.slane %v353, 4
    %v355 = vrot.slane %v335, 7
    %v356 = vsel %vm345, %v354, %v355
    %v357 = vrot.slane %v355, 4
    %v358 = vrot.slane %v336, 7
    %v359 = vsel %vm345, %v357, %v358
    %v360 = vld [vmem:[#allocation8] sm:$0xf]
    %v361 = vld [vmem:[#allocation8 + $0x4] sm:$0xf]
    %v362 = vld [vmem:[#allocation8 + $0x8] sm:$0xf]
    %v363 = vld [vmem:[#allocation8 + $0xc] sm:$0xf]
    %v364 = vld [vmem:[#allocation8 + $0x10] sm:$0xf]
    %v365 = vld [vmem:[#allocation8 + $0x14] sm:$0xf]
    %v366 = vld [vmem:[#allocation8 + $0x18] sm:$0xf]
    %v367 = vld [vmem:[#allocation8 + $0x1c] sm:$0xf]
    %v368 = vld [vmem:[#allocation8 + $0x20] sm:$0xf]
    %v369 = vld [vmem:[#allocation8 + $0x24] sm:$0xf]
    %v370 = vld [vmem:[#allocation8 + $0x28] sm:$0xf]
    %v371 = vld [vmem:[#allocation8 + $0x2c] sm:$0xf]
    %v372 = vld [vmem:[#allocation8 + $0x30] sm:$0xf]
    %v373 = vld [vmem:[#allocation8 + $0x34] sm:$0xf]
    %v374 = vld [vmem:[#allocation8 + $0x38] sm:$0xf]
    %v375 = vld [vmem:[#allocation8 + $0x3c] sm:$0xf]
    %v376 = vld [vmem:[#allocation2 + $0x8] sm:$0xf]
    %v377 = vld [vmem:[#allocation2 + $0x18] sm:$0xf]
    %s378 = scalar_lea.vmem [#allocation8], 64
    %v379 = vld [vmem:[%s378] sm:$0xf]
    %v380 = vld [vmem:[%s378 + $0x4] sm:$0xf]
    %v381 = vld [vmem:[%s378 + $0x8] sm:$0xf]
    %v382 = vld [vmem:[%s378 + $0xc] sm:$0xf]
    %v383 = vld [vmem:[%s378 + $0x10] sm:$0xf]
    %v384 = vld [vmem:[%s378 + $0x14] sm:$0xf]
    %v385 = vld [vmem:[%s378 + $0x18] sm:$0xf]
    %v386 = vld [vmem:[%s378 + $0x1c] sm:$0xf]
    %v387 = vld [vmem:[%s378 + $0x20] sm:$0xf]
    %v388 = vld [vmem:[%s378 + $0x24] sm:$0xf]
    %v389 = vld [vmem:[%s378 + $0x28] sm:$0xf]
    %v390 = vld [vmem:[%s378 + $0x2c] sm:$0xf]
    %v391 = vld [vmem:[%s378 + $0x30] sm:$0xf]
    %v392 = vld [vmem:[%s378 + $0x34] sm:$0xf]
    %v393 = vld [vmem:[%s378 + $0x38] sm:$0xf]
    %v394 = vld [vmem:[%s378 + $0x3c] sm:$0xf]
    %v397 = vunpack.c.l.b16 %v332
    %v398 = vunpack.c.l.b16 %v376
    %v399 = vunpack.c.l.b16 %v335
    %v400 = vunpack.c.l.b16 %v377
    %v401 = vpack.c.b16 %v398, %v397
    %v402 = vpack.c.b16 %v400, %v399
    %v421 = vunpack.c.l.b16 %v379
    %v422 = vunpack.c.l.b16 %v380
    %v423 = vunpack.c.l.b16 %v381
    %v424 = vunpack.c.l.b16 %v382
    %v425 = vunpack.c.l.b16 %v383
    %v426 = vunpack.c.l.b16 %v384
    %v427 = vunpack.c.l.b16 %v385
    %v428 = vunpack.c.l.b16 %v386
    %v429 = vunpack.c.l.b16 %v387
    %v430 = vunpack.c.l.b16 %v388
    %v431 = vunpack.c.l.b16 %v389
    %v432 = vunpack.c.l.b16 %v390
    %v433 = vunpack.c.l.b16 %v391
    %v434 = vunpack.c.l.b16 %v392
    %v435 = vunpack.c.l.b16 %v393
    %v436 = vunpack.c.l.b16 %v394
    %v437 = vpack.c.b16 %v422, %v421
    %v438 = vpack.c.b16 %v424, %v423
    %v439 = vpack.c.b16 %v426, %v425
    %v440 = vpack.c.b16 %v428, %v427
    %v441 = vpack.c.b16 %v430, %v429
    %v442 = vpack.c.b16 %v432, %v431
    %v443 = vpack.c.b16 %v434, %v433
    %v444 = vpack.c.b16 %v436, %v435
    %453 = vmatprep.subr.bf16.mxu0 0
    %454 = vmatpush1.bf16.msra.mxu0 %v444
    %455 = vmatprep.subr.bf16.mxu0 0
    %456 = vmatpush1.bf16.msra.mxu0 %v443
    %457 = vmatprep.subr.bf16.mxu0 0
    %458 = vmatpush1.bf16.msra.mxu0 %v442
    %459 = vmatprep.subr.bf16.mxu0 0
    %460 = vmatpush1.bf16.msra.mxu0 %v441
    %461 = vmatprep.subr.bf16.mxu0 0
    %462 = vmatpush1.bf16.msra.mxu0 %v440
    %463 = vmatprep.subr.bf16.mxu0 0
    %464 = vmatpush1.bf16.msra.mxu0 %v439
    %465 = vmatprep.subr.bf16.mxu0 0
    %466 = vmatpush1.bf16.msra.mxu0 %v438
    %467 = vmatprep.subr.bf16.mxu0 0
    %468 = vmatpush1.bf16.msra.mxu0 %v437
    %469 = vmatprep.subr.bf16.mxu0 0
    %470 = vmatpush2.bf16.msra.mxu0 0
    %471 = vmatprep.subr.bf16.mxu0 0
    %472 = vmatpush2.bf16.msra.mxu0 0
    %473 = vmatprep.subr.bf16.mxu0 0
    %474 = vmatpush2.bf16.msra.mxu0 0
    %475 = vmatprep.subr.bf16.mxu0 0
    %476 = vmatpush2.bf16.msra.mxu0 0
    %477 = vmatprep.subr.bf16.mxu0 0
    %478 = vmatpush2.bf16.msra.mxu0 0
    %479 = vmatprep.subr.bf16.mxu0 0
    %480 = vmatpush2.bf16.msra.mxu0 0
    %481 = vmatprep.subr.bf16.mxu0 0
    %482 = vmatpush2.bf16.msra.mxu0 0
    %483 = vmatprep.subr.bf16.mxu0 0
    %484 = vmatpush2.bf16.msra.mxu0 0
    %485 = vmatprep.mubr.bf16.mxu0 0
    %486 = vmatmul.mubr.bf16.gmra.mxu0 %v401
    %v487 = vpop.f32.mrf.mxu0
    %v488 = vadd.f32 0.0, %v487
    %v489 = vpop.f32.mrf.mxu0
    %v490 = vpop.f32.mrf.mxu0
    %v491 = vadd.f32 0.0, %v490
    %v492 = vpop.f32.mrf.mxu0
    %493 = vmatprep.mubr.bf16.mxu0 0
    %494 = vmatmul.mubr.bf16.gmra.mxu0 %v402
    %v495 = vpop.f32.mrf.mxu0
    %v496 = vadd.f32 0.0, %v495
    %v497 = vpop.f32.mrf.mxu0
    %v498 = vpop.f32.mrf.mxu0
    %v499 = vadd.f32 0.0, %v498
    %v500 = vpop.f32.mrf.mxu0
    %501 = vdwg.mxu0
    %v502 = vunpack.c.l.b16 %v349
    %v503 = vunpack.c.l.b16 %v352
    %v504 = vunpack.c.l.b16 %v356
    %v505 = vunpack.c.l.b16 %v359
    %v506 = vpack.c.b16 %v503, %v502
    %v507 = vpack.c.b16 %v505, %v504
    %v526 = vunpack.c.l.b16 %v360
    %v527 = vunpack.c.l.b16 %v361
    %v528 = vunpack.c.l.b16 %v362
    %v529 = vunpack.c.l.b16 %v363
    %v530 = vunpack.c.l.b16 %v364
    %v531 = vunpack.c.l.b16 %v365
    %v532 = vunpack.c.l.b16 %v366
    %v533 = vunpack.c.l.b16 %v367
    %v534 = vunpack.c.l.b16 %v368
    %v535 = vunpack.c.l.b16 %v369
    %v536 = vunpack.c.l.b16 %v370
    %v537 = vunpack.c.l.b16 %v371
    %v538 = vunpack.c.l.b16 %v372
    %v539 = vunpack.c.l.b16 %v373
    %v540 = vunpack.c.l.b16 %v374
    %v541 = vunpack.c.l.b16 %v375
    %v542 = vpack.c.b16 %v527, %v526
    %v543 = vpack.c.b16 %v529, %v528
    %v544 = vpack.c.b16 %v531, %v530
    %v545 = vpack.c.b16 %v533, %v532
    %v546 = vpack.c.b16 %v535, %v534
    %v547 = vpack.c.b16 %v537, %v536
    %v548 = vpack.c.b16 %v539, %v538
    %v549 = vpack.c.b16 %v541, %v540
    %558 = vmatprep.subr.bf16.mxu0 0
    %559 = vmatpush1.bf16.msra.mxu0 %v549
    %560 = vmatprep.subr.bf16.mxu0 0
    %561 = vmatpush1.bf16.msra.mxu0 %v548
    %562 = vmatprep.subr.bf16.mxu0 0
    %563 = vmatpush1.bf16.msra.mxu0 %v547
    %564 = vmatprep.subr.bf16.mxu0 0
    %565 = vmatpush1.bf16.msra.mxu0 %v546
    %566 = vmatprep.subr.bf16.mxu0 0
    %567 = vmatpush1.bf16.msra.mxu0 %v545
    %568 = vmatprep.subr.bf16.mxu0 0
    %569 = vmatpush1.bf16.msra.mxu0 %v544
    %570 = vmatprep.subr.bf16.mxu0 0
    %571 = vmatpush1.bf16.msra.mxu0 %v543
    %572 = vmatprep.subr.bf16.mxu0 0
    %573 = vmatpush1.bf16.msra.mxu0 %v542
    %574 = vmatprep.subr.bf16.mxu0 0
    %575 = vmatpush2.bf16.msra.mxu0 0
    %576 = vmatprep.subr.bf16.mxu0 0
    %577 = vmatpush2.bf16.msra.mxu0 0
    %578 = vmatprep.subr.bf16.mxu0 0
    %579 = vmatpush2.bf16.msra.mxu0 0
    %580 = vmatprep.subr.bf16.mxu0 0
    %581 = vmatpush2.bf16.msra.mxu0 0
    %582 = vmatprep.subr.bf16.mxu0 0
    %583 = vmatpush2.bf16.msra.mxu0 0
    %584 = vmatprep.subr.bf16.mxu0 0
    %585 = vmatpush2.bf16.msra.mxu0 0
    %586 = vmatprep.subr.bf16.mxu0 0
    %587 = vmatpush2.bf16.msra.mxu0 0
    %588 = vmatprep.subr.bf16.mxu0 0
    %589 = vmatpush2.bf16.msra.mxu0 0
    %590 = vmatprep.mubr.bf16.mxu0 0
    %591 = vmatmul.mubr.bf16.gmra.mxu0 %v506
    %v592 = vpop.f32.mrf.mxu0
    %v593 = vadd.f32 %v488, %v592
    %v594 = vpop.f32.mrf.mxu0
    %v595 = vpop.f32.mrf.mxu0
    %v596 = vadd.f32 %v491, %v595
    %v597 = vpop.f32.mrf.mxu0
    %598 = vmatprep.mubr.bf16.mxu0 0
    %599 = vmatmul.mubr.bf16.gmra.mxu0 %v507
    %v600 = vpop.f32.mrf.mxu0
    %v601 = vadd.f32 %v496, %v600
    %v602 = vpop.f32.mrf.mxu0
    %v603 = vpop.f32.mrf.mxu0
    %v604 = vadd.f32 %v499, %v603
    %v605 = vpop.f32.mrf.mxu0
    %606 = vdwg.mxu0
    %v607 = vld [vmem:[#allocation2 + $0x4] sm:$0xe]
    %v608 = vld [vmem:[#allocation2 + $0x8] sm:$0xf]
    %v609 = vld [vmem:[#allocation2 + $0xc] sm:$0x1]
    %v610 = vld [vmem:[#allocation2 + $0x14] sm:$0xe]
    %v611 = vld [vmem:[#allocation2 + $0x18] sm:$0xf]
    %v612 = vld [vmem:[#allocation2 + $0x1c] sm:$0x1]
    %vm619 = vcmask 1042432
    %vm620 = vcmask 1046532
    %vm621 = vmor %vm619, %vm620
    %v622 = vrot.slane %v607, 5
    %v623 = vrot.slane %v622, 4
    %v624 = vrot.slane %v608, 5
    %v625 = vsel %vm621, %v623, %v624
    %v626 = vrot.slane %v624, 4
    %v627 = vrot.slane %v609, 5
    %v628 = vsel %vm621, %v626, %v627
    %v629 = vrot.slane %v610, 5
    %v630 = vrot.slane %v629, 4
    %v631 = vrot.slane %v611, 5
    %v632 = vsel %vm621, %v630, %v631
    %v633 = vrot.slane %v631, 4
    %v634 = vrot.slane %v612, 5
    %v635 = vsel %vm621, %v633, %v634
    %s636 = scalar_lea.vmem [#allocation8], 128
    %v637 = vld [vmem:[%s636] sm:$0xf]
    %v638 = vld [vmem:[%s636 + $0x4] sm:$0xf]
    %v639 = vld [vmem:[%s636 + $0x8] sm:$0xf]
    %v640 = vld [vmem:[%s636 + $0xc] sm:$0xf]
    %v641 = vld [vmem:[%s636 + $0x10] sm:$0xf]
    %v642 = vld [vmem:[%s636 + $0x14] sm:$0xf]
    %v643 = vld [vmem:[%s636 + $0x18] sm:$0xf]
    %v644 = vld [vmem:[%s636 + $0x1c] sm:$0xf]
    %v645 = vld [vmem:[%s636 + $0x20] sm:$0xf]
    %v646 = vld [vmem:[%s636 + $0x24] sm:$0xf]
    %v647 = vld [vmem:[%s636 + $0x28] sm:$0xf]
    %v648 = vld [vmem:[%s636 + $0x2c] sm:$0xf]
    %v649 = vld [vmem:[%s636 + $0x30] sm:$0xf]
    %v650 = vld [vmem:[%s636 + $0x34] sm:$0xf]
    %v651 = vld [vmem:[%s636 + $0x38] sm:$0xf]
    %v652 = vld [vmem:[%s636 + $0x3c] sm:$0xf]
    %v653 = vunpack.c.l.b16 %v625
    %v654 = vunpack.c.l.b16 %v628
    %v655 = vunpack.c.l.b16 %v632
    %v656 = vunpack.c.l.b16 %v635
    %v657 = vpack.c.b16 %v654, %v653
    %v658 = vpack.c.b16 %v656, %v655
    %v677 = vunpack.c.l.b16 %v637
    %v678 = vunpack.c.l.b16 %v638
    %v679 = vunpack.c.l.b16 %v639
    %v680 = vunpack.c.l.b16 %v640
    %v681 = vunpack.c.l.b16 %v641
    %v682 = vunpack.c.l.b16 %v642
    %v683 = vunpack.c.l.b16 %v643
    %v684 = vunpack.c.l.b16 %v644
    %v685 = vunpack.c.l.b16 %v645
    %v686 = vunpack.c.l.b16 %v646
    %v687 = vunpack.c.l.b16 %v647
    %v688 = vunpack.c.l.b16 %v648
    %v689 = vunpack.c.l.b16 %v649
    %v690 = vunpack.c.l.b16 %v650
    %v691 = vunpack.c.l.b16 %v651
    %v692 = vunpack.c.l.b16 %v652
    %v693 = vpack.c.b16 %v678, %v677
    %v694 = vpack.c.b16 %v680, %v679
    %v695 = vpack.c.b16 %v682, %v681
    %v696 = vpack.c.b16 %v684, %v683
    %v697 = vpack.c.b16 %v686, %v685
    %v698 = vpack.c.b16 %v688, %v687
    %v699 = vpack.c.b16 %v690, %v689
    %v700 = vpack.c.b16 %v692, %v691
    %709 = vmatprep.subr.bf16.mxu0 0
    %710 = vmatpush1.bf16.msra.mxu0 %v700
    %711 = vmatprep.subr.bf16.mxu0 0
    %712 = vmatpush1.bf16.msra.mxu0 %v699
    %713 = vmatprep.subr.bf16.mxu0 0
    %714 = vmatpush1.bf16.msra.mxu0 %v698
    %715 = vmatprep.subr.bf16.mxu0 0
    %716 = vmatpush1.bf16.msra.mxu0 %v697
    %717 = vmatprep.subr.bf16.mxu0 0
    %718 = vmatpush1.bf16.msra.mxu0 %v696
    %719 = vmatprep.subr.bf16.mxu0 0
    %720 = vmatpush1.bf16.msra.mxu0 %v695
    %721 = vmatprep.subr.bf16.mxu0 0
    %722 = vmatpush1.bf16.msra.mxu0 %v694
    %723 = vmatprep.subr.bf16.mxu0 0
    %724 = vmatpush1.bf16.msra.mxu0 %v693
    %725 = vmatprep.subr.bf16.mxu0 0
    %726 = vmatpush2.bf16.msra.mxu0 0
    %727 = vmatprep.subr.bf16.mxu0 0
    %728 = vmatpush2.bf16.msra.mxu0 0
    %729 = vmatprep.subr.bf16.mxu0 0
    %730 = vmatpush2.bf16.msra.mxu0 0
    %731 = vmatprep.subr.bf16.mxu0 0
    %732 = vmatpush2.bf16.msra.mxu0 0
    %733 = vmatprep.subr.bf16.mxu0 0
    %734 = vmatpush2.bf16.msra.mxu0 0
    %735 = vmatprep.subr.bf16.mxu0 0
    %736 = vmatpush2.bf16.msra.mxu0 0
    %737 = vmatprep.subr.bf16.mxu0 0
    %738 = vmatpush2.bf16.msra.mxu0 0
    %739 = vmatprep.subr.bf16.mxu0 0
    %740 = vmatpush2.bf16.msra.mxu0 0
    %741 = vmatprep.mubr.bf16.mxu0 0
    %742 = vmatmul.mubr.bf16.gmra.mxu0 %v657
    %v743 = vpop.f32.mrf.mxu0
    %v744 = vadd.f32 0.0, %v743
    %v745 = vpop.f32.mrf.mxu0
    %v746 = vpop.f32.mrf.mxu0
    %v747 = vadd.f32 0.0, %v746
    %v748 = vpop.f32.mrf.mxu0
    %749 = vmatprep.mubr.bf16.mxu0 0
    %750 = vmatmul.mubr.bf16.gmra.mxu0 %v658
    %v751 = vpop.f32.mrf.mxu0
    %v752 = vadd.f32 0.0, %v751
    %v753 = vpop.f32.mrf.mxu0
    %v754 = vpop.f32.mrf.mxu0
    %v755 = vadd.f32 0.0, %v754
    %v756 = vpop.f32.mrf.mxu0
    %757 = vdwg.mxu0
    %v758 = vadd.f32 %v593, %v744
    %v759 = vadd.f32 %v596, %v747
    %v760 = vadd.f32 %v601, %v752
    %v761 = vadd.f32 %v604, %v755
    %v762 = vld [vmem:[%s4] sm:$0x1]
    %v764 = vlaneseq
    %v765 = vshrl.u32 %v764, 7
    %v766 = vsub.s32 0, %v765
    %v767 = vrot.slane %v762, %v766
    %v769 = vadd.f32 %v758, %v767
    %v770 = vadd.f32 %v759, %v767
    %v771 = vadd.f32 %v760, %v767
    %v772 = vadd.f32 %v761, %v767
    %v773 = vmax.f32 %v769, 0.0
    %v774 = vmax.f32 %v770, 0.0
    %v775 = vmax.f32 %v771, 0.0
    %v776 = vmax.f32 %v772, 0.0
    %v777 = vpack.c.bf16 %v774, %v773
    %v778 = vpack.c.bf16 %v776, %v775
    %v781 = vunpack.c.l.b16 %v777
    %v782 = vunpack.c.h.b16 %v777
    %v783 = vunpack.c.l.b16 %v778
    %v784 = vunpack.c.h.b16 %v778
    %v785 = vpack.c.b16 %v781, %v781
    %v786 = vpack.c.b16 %v782, %v782
    %v787 = vpack.c.b16 %v783, %v783
    %v788 = vpack.c.b16 %v784, %v784
    %793 = vst [vmem:[#allocation2 + $0x4] sm:$0xf] %v785
    %794 = vst [vmem:[#allocation2 + $0x8] sm:$0xf] %v786
    %795 = vst [vmem:[#allocation2 + $0x14] sm:$0xf] %v787
    %796 = vst [vmem:[#allocation2 + $0x18] sm:$0xf] %v788
    %v797 = vld [vmem:[#allocation2] sm:$0xc]
    %v798 = vld [vmem:[#allocation2 + $0x4] sm:$0xf]
    %v799 = vld [vmem:[#allocation2 + $0x8] sm:$0x7]
    %v800 = vld [vmem:[#allocation2 + $0x10] sm:$0xc]
    %v801 = vld [vmem:[#allocation2 + $0x14] sm:$0xf]
    %v802 = vld [vmem:[#allocation2 + $0x18] sm:$0x7]
    %vm803 = vsmask.f32 1280
    %vm804 = vsmask.f32 5392
    %vm805 = vmor %vm803, %vm804
    %v807 = vshrl.u32 %v797, 16
    %v809 = vrot.slane %v807, 6
    %v810 = vshll.u32 %v797, 16
    %v812 = vrot.slane %v810, 7
    %v813 = vor.u32 %v809, %v812
    %v814 = vrot.slane %v813, 4
    %v816 = vshrl.u32 %v798, 16
    %v818 = vrot.slane %v816, 6
    %v819 = vshll.u32 %v798, 16
    %v821 = vrot.slane %v819, 7
    %v822 = vor.u32 %v818, %v821
    %v823 = vsel %vm805, %v814, %v822
    %v824 = vrot.slane %v822, 4
    %v826 = vshrl.u32 %v799, 16
    %v828 = vrot.slane %v826, 6
    %v829 = vshll.u32 %v799, 16
    %v831 = vrot.slane %v829, 7
    %v832 = vor.u32 %v828, %v831
    %v833 = vsel %vm805, %v824, %v832
    %v835 = vshrl.u32 %v800, 16
    %v837 = vrot.slane %v835, 6
    %v838 = vshll.u32 %v800, 16
    %v840 = vrot.slane %v838, 7
    %v841 = vor.u32 %v837, %v840
    %v842 = vrot.slane %v841, 4
    %v844 = vshrl.u32 %v801, 16
    %v846 = vrot.slane %v844, 6
    %v847 = vshll.u32 %v801, 16
    %v849 = vrot.slane %v847, 7
    %v850 = vor.u32 %v846, %v849
    %v851 = vsel %vm805, %v842, %v850
    %v852 = vrot.slane %v850, 4
    %v854 = vshrl.u32 %v802, 16
    %v856 = vrot.slane %v854, 6
    %v857 = vshll.u32 %v802, 16
    %v859 = vrot.slane %v857, 7
    %v860 = vor.u32 %v856, %v859
    %v861 = vsel %vm805, %v852, %v860
    %v862 = vld [vmem:[#allocation9] sm:$0xf]
    %v863 = vld [vmem:[#allocation9 + $0x4] sm:$0xf]
    %v864 = vld [vmem:[#allocation9 + $0x8] sm:$0xf]
    %v865 = vld [vmem:[#allocation9 + $0xc] sm:$0xf]
    %v866 = vld [vmem:[#allocation9 + $0x10] sm:$0xf]
    %v867 = vld [vmem:[#allocation9 + $0x14] sm:$0xf]
    %v868 = vld [vmem:[#allocation9 + $0x18] sm:$0xf]
    %v869 = vld [vmem:[#allocation9 + $0x1c] sm:$0xf]
    %v870 = vld [vmem:[#allocation9 + $0x20] sm:$0xf]
    %v871 = vld [vmem:[#allocation9 + $0x24] sm:$0xf]
    %v872 = vld [vmem:[#allocation9 + $0x28] sm:$0xf]
    %v873 = vld [vmem:[#allocation9 + $0x2c] sm:$0xf]
    %v874 = vld [vmem:[#allocation9 + $0x30] sm:$0xf]
    %v875 = vld [vmem:[#allocation9 + $0x34] sm:$0xf]
    %v876 = vld [vmem:[#allocation9 + $0x38] sm:$0xf]
    %v877 = vld [vmem:[#allocation9 + $0x3c] sm:$0xf]
    %v878 = vld [vmem:[#allocation2 + $0x8] sm:$0xf]
    %v879 = vld [vmem:[#allocation2 + $0x18] sm:$0xf]
    %s880 = scalar_lea.vmem [#allocation9], 64
    %v881 = vld [vmem:[%s880] sm:$0xf]
    %v882 = vld [vmem:[%s880 + $0x4] sm:$0xf]
    %v883 = vld [vmem:[%s880 + $0x8] sm:$0xf]
    %v884 = vld [vmem:[%s880 + $0xc] sm:$0xf]
    %v885 = vld [vmem:[%s880 + $0x10] sm:$0xf]
    %v886 = vld [vmem:[%s880 + $0x14] sm:$0xf]
    %v887 = vld [vmem:[%s880 + $0x18] sm:$0xf]
    %v888 = vld [vmem:[%s880 + $0x1c] sm:$0xf]
    %v889 = vld [vmem:[%s880 + $0x20] sm:$0xf]
    %v890 = vld [vmem:[%s880 + $0x24] sm:$0xf]
    %v891 = vld [vmem:[%s880 + $0x28] sm:$0xf]
    %v892 = vld [vmem:[%s880 + $0x2c] sm:$0xf]
    %v893 = vld [vmem:[%s880 + $0x30] sm:$0xf]
    %v894 = vld [vmem:[%s880 + $0x34] sm:$0xf]
    %v895 = vld [vmem:[%s880 + $0x38] sm:$0xf]
    %v896 = vld [vmem:[%s880 + $0x3c] sm:$0xf]
    %v901 = vunpack.c.l.b16 %v798
    %v902 = vunpack.c.l.b16 %v878
    %v903 = vunpack.c.l.b16 %v801
    %v904 = vunpack.c.l.b16 %v879
    %v905 = vpack.c.b16 %v902, %v901
    %v906 = vpack.c.b16 %v904, %v903
    %v925 = vunpack.c.l.b16 %v881
    %v926 = vunpack.c.l.b16 %v882
    %v927 = vunpack.c.l.b16 %v883
    %v928 = vunpack.c.l.b16 %v884
    %v929 = vunpack.c.l.b16 %v885
    %v930 = vunpack.c.l.b16 %v886
    %v931 = vunpack.c.l.b16 %v887
    %v932 = vunpack.c.l.b16 %v888
    %v933 = vunpack.c.l.b16 %v889
    %v934 = vunpack.c.l.b16 %v890
    %v935 = vunpack.c.l.b16 %v891
    %v936 = vunpack.c.l.b16 %v892
    %v937 = vunpack.c.l.b16 %v893
    %v938 = vunpack.c.l.b16 %v894
    %v939 = vunpack.c.l.b16 %v895
    %v940 = vunpack.c.l.b16 %v896
    %v941 = vpack.c.b16 %v926, %v925
    %v942 = vpack.c.b16 %v928, %v927
    %v943 = vpack.c.b16 %v930, %v929
    %v944 = vpack.c.b16 %v932, %v931
    %v945 = vpack.c.b16 %v934, %v933
    %v946 = vpack.c.b16 %v936, %v935
    %v947 = vpack.c.b16 %v938, %v937
    %v948 = vpack.c.b16 %v940, %v939
    %957 = vmatprep.subr.bf16.mxu0 0
    %958 = vmatpush1.bf16.msra.mxu0 %v948
    %959 = vmatprep.subr.bf16.mxu0 0
    %960 = vmatpush1.bf16.msra.mxu0 %v947
    %961 = vmatprep.subr.bf16.mxu0 0
    %962 = vmatpush1.bf16.msra.mxu0 %v946
    %963 = vmatprep.subr.bf16.mxu0 0
    %964 = vmatpush1.bf16.msra.mxu0 %v945
    %965 = vmatprep.subr.bf16.mxu0 0
    %966 = vmatpush1.bf16.msra.mxu0 %v944
    %967 = vmatprep.subr.bf16.mxu0 0
    %968 = vmatpush1.bf16.msra.mxu0 %v943
    %969 = vmatprep.subr.bf16.mxu0 0
    %970 = vmatpush1.bf16.msra.mxu0 %v942
    %971 = vmatprep.subr.bf16.mxu0 0
    %972 = vmatpush1.bf16.msra.mxu0 %v941
    %973 = vmatprep.subr.bf16.mxu0 0
    %974 = vmatpush2.bf16.msra.mxu0 0
    %975 = vmatprep.subr.bf16.mxu0 0
    %976 = vmatpush2.bf16.msra.mxu0 0
    %977 = vmatprep.subr.bf16.mxu0 0
    %978 = vmatpush2.bf16.msra.mxu0 0
    %979 = vmatprep.subr.bf16.mxu0 0
    %980 = vmatpush2.bf16.msra.mxu0 0
    %981 = vmatprep.subr.bf16.mxu0 0
    %982 = vmatpush2.bf16.msra.mxu0 0
    %983 = vmatprep.subr.bf16.mxu0 0
    %984 = vmatpush2.bf16.msra.mxu0 0
    %985 = vmatprep.subr.bf16.mxu0 0
    %986 = vmatpush2.bf16.msra.mxu0 0
    %987 = vmatprep.subr.bf16.mxu0 0
    %988 = vmatpush2.bf16.msra.mxu0 0
    %989 = vmatprep.mubr.bf16.mxu0 0
    %990 = vmatmul.mubr.bf16.gmra.mxu0 %v905
    %v991 = vpop.f32.mrf.mxu0
    %v992 = vadd.f32 0.0, %v991
    %v993 = vpop.f32.mrf.mxu0
    %v994 = vpop.f32.mrf.mxu0
    %v995 = vadd.f32 0.0, %v994
    %v996 = vpop.f32.mrf.mxu0
    %997 = vmatprep.mubr.bf16.mxu0 0
    %998 = vmatmul.mubr.bf16.gmra.mxu0 %v906
    %v999 = vpop.f32.mrf.mxu0
    %v1000 = vadd.f32 0.0, %v999
    %v1001 = vpop.f32.mrf.mxu0
    %v1002 = vpop.f32.mrf.mxu0
    %v1003 = vadd.f32 0.0, %v1002
    %v1004 = vpop.f32.mrf.mxu0
    %1005 = vdwg.mxu0
    %v1006 = vunpack.c.l.b16 %v823
    %v1007 = vunpack.c.l.b16 %v833
    %v1008 = vunpack.c.l.b16 %v851
    %v1009 = vunpack.c.l.b16 %v861
    %v1010 = vpack.c.b16 %v1007, %v1006
    %v1011 = vpack.c.b16 %v1009, %v1008
    %v1030 = vunpack.c.l.b16 %v862
    %v1031 = vunpack.c.l.b16 %v863
    %v1032 = vunpack.c.l.b16 %v864
    %v1033 = vunpack.c.l.b16 %v865
    %v1034 = vunpack.c.l.b16 %v866
    %v1035 = vunpack.c.l.b16 %v867
    %v1036 = vunpack.c.l.b16 %v868
    %v1037 = vunpack.c.l.b16 %v869
    %v1038 = vunpack.c.l.b16 %v870
    %v1039 = vunpack.c.l.b16 %v871
    %v1040 = vunpack.c.l.b16 %v872
    %v1041 = vunpack.c.l.b16 %v873
    %v1042 = vunpack.c.l.b16 %v874
    %v1043 = vunpack.c.l.b16 %v875
    %v1044 = vunpack.c.l.b16 %v876
    %v1045 = vunpack.c.l.b16 %v877
    %v1046 = vpack.c.b16 %v1031, %v1030
    %v1047 = vpack.c.b16 %v1033, %v1032
    %v1048 = vpack.c.b16 %v1035, %v1034
    %v1049 = vpack.c.b16 %v1037, %v1036
    %v1050 = vpack.c.b16 %v1039, %v1038
    %v1051 = vpack.c.b16 %v1041, %v1040
    %v1052 = vpack.c.b16 %v1043, %v1042
    %v1053 = vpack.c.b16 %v1045, %v1044
    %1062 = vmatprep.subr.bf16.mxu0 0
    %1063 = vmatpush1.bf16.msra.mxu0 %v1053
    %1064 = vmatprep.subr.bf16.mxu0 0
    %1065 = vmatpush1.bf16.msra.mxu0 %v1052
    %1066 = vmatprep.subr.bf16.mxu0 0
    %1067 = vmatpush1.bf16.msra.mxu0 %v1051
    %1068 = vmatprep.subr.bf16.mxu0 0
    %1069 = vmatpush1.bf16.msra.mxu0 %v1050
    %1070 = vmatprep.subr.bf16.mxu0 0
    %1071 = vmatpush1.bf16.msra.mxu0 %v1049
    %1072 = vmatprep.subr.bf16.mxu0 0
    %1073 = vmatpush1.bf16.msra.mxu0 %v1048
    %1074 = vmatprep.subr.bf16.mxu0 0
    %1075 = vmatpush1.bf16.msra.mxu0 %v1047
    %1076 = vmatprep.subr.bf16.mxu0 0
    %1077 = vmatpush1.bf16.msra.mxu0 %v1046
    %1078 = vmatprep.subr.bf16.mxu0 0
    %1079 = vmatpush2.bf16.msra.mxu0 0
    %1080 = vmatprep.subr.bf16.mxu0 0
    %1081 = vmatpush2.bf16.msra.mxu0 0
    %1082 = vmatprep.subr.bf16.mxu0 0
    %1083 = vmatpush2.bf16.msra.mxu0 0
    %1084 = vmatprep.subr.bf16.mxu0 0
    %1085 = vmatpush2.bf16.msra.mxu0 0
    %1086 = vmatprep.subr.bf16.mxu0 0
    %1087 = vmatpush2.bf16.msra.mxu0 0
    %1088 = vmatprep.subr.bf16.mxu0 0
    %1089 = vmatpush2.bf16.msra.mxu0 0
    %1090 = vmatprep.subr.bf16.mxu0 0
    %1091 = vmatpush2.bf16.msra.mxu0 0
    %1092 = vmatprep.subr.bf16.mxu0 0
    %1093 = vmatpush2.bf16.msra.mxu0 0
    %1094 = vmatprep.mubr.bf16.mxu0 0
    %1095 = vmatmul.mubr.bf16.gmra.mxu0 %v1010
    %v1096 = vpop.f32.mrf.mxu0
    %v1097 = vadd.f32 %v992, %v1096
    %v1098 = vpop.f32.mrf.mxu0
    %v1099 = vpop.f32.mrf.mxu0
    %v1100 = vadd.f32 %v995, %v1099
    %v1101 = vpop.f32.mrf.mxu0
    %1102 = vmatprep.mubr.bf16.mxu0 0
    %1103 = vmatmul.mubr.bf16.gmra.mxu0 %v1011
    %v1104 = vpop.f32.mrf.mxu0
    %v1105 = vadd.f32 %v1000, %v1104
    %v1106 = vpop.f32.mrf.mxu0
    %v1107 = vpop.f32.mrf.mxu0
    %v1108 = vadd.f32 %v1003, %v1107
    %v1109 = vpop.f32.mrf.mxu0
    %1110 = vdwg.mxu0
    %v1111 = vld [vmem:[#allocation2 + $0x4] sm:$0xe]
    %v1112 = vld [vmem:[#allocation2 + $0x8] sm:$0xf]
    %v1113 = vld [vmem:[#allocation2 + $0xc] sm:$0x3]
    %v1114 = vld [vmem:[#allocation2 + $0x14] sm:$0xe]
    %v1115 = vld [vmem:[#allocation2 + $0x18] sm:$0xf]
    %v1116 = vld [vmem:[#allocation2 + $0x1c] sm:$0x3]
    %vm1117 = vsmask.f32 2304
    %vm1118 = vsmask.f32 6416
    %vm1119 = vmor %vm1117, %vm1118
    %v1121 = vshrl.u32 %v1111, 16
    %v1123 = vrot.slane %v1121, 5
    %v1124 = vshll.u32 %v1111, 16
    %v1126 = vrot.slane %v1124, 6
    %v1127 = vor.u32 %v1123, %v1126
    %v1128 = vrot.slane %v1127, 4
    %v1130 = vshrl.u32 %v1112, 16
    %v1132 = vrot.slane %v1130, 5
    %v1133 = vshll.u32 %v1112, 16
    %v1135 = vrot.slane %v1133, 6
    %v1136 = vor.u32 %v1132, %v1135
    %v1137 = vsel %vm1119, %v1128, %v1136
    %v1138 = vrot.slane %v1136, 4
    %v1140 = vshrl.u32 %v1113, 16
    %v1142 = vrot.slane %v1140, 5
    %v1143 = vshll.u32 %v1113, 16
    %v1145 = vrot.slane %v1143, 6
    %v1146 = vor.u32 %v1142, %v1145
    %v1147 = vsel %vm1119, %v1138, %v1146
    %v1149 = vshrl.u32 %v1114, 16
    %v1151 = vrot.slane %v1149, 5
    %v1152 = vshll.u32 %v1114, 16
    %v1154 = vrot.slane %v1152, 6
    %v1155 = vor.u32 %v1151, %v1154
    %v1156 = vrot.slane %v1155, 4
    %v1158 = vshrl.u32 %v1115, 16
    %v1160 = vrot.slane %v1158, 5
    %v1161 = vshll.u32 %v1115, 16
    %v1163 = vrot.slane %v1161, 6
    %v1164 = vor.u32 %v1160, %v1163
    %v1165 = vsel %vm1119, %v1156, %v1164
    %v1166 = vrot.slane %v1164, 4
    %v1168 = vshrl.u32 %v1116, 16
    %v1170 = vrot.slane %v1168, 5
    %v1171 = vshll.u32 %v1116, 16
    %v1173 = vrot.slane %v1171, 6
    %v1174 = vor.u32 %v1170, %v1173
    %v1175 = vsel %vm1119, %v1166, %v1174
    %s1176 = scalar_lea.vmem [#allocation9], 128
    %v1177 = vld [vmem:[%s1176] sm:$0xf]
    %v1178 = vld [vmem:[%s1176 + $0x4] sm:$0xf]
    %v1179 = vld [vmem:[%s1176 + $0x8] sm:$0xf]
    %v1180 = vld [vmem:[%s1176 + $0xc] sm:$0xf]
    %v1181 = vld [vmem:[%s1176 + $0x10] sm:$0xf]
    %v1182 = vld [vmem:[%s1176 + $0x14] sm:$0xf]
    %v1183 = vld [vmem:[%s1176 + $0x18] sm:$0xf]
    %v1184 = vld [vmem:[%s1176 + $0x1c] sm:$0xf]
    %v1185 = vld [vmem:[%s1176 + $0x20] sm:$0xf]
    %v1186 = vld [vmem:[%s1176 + $0x24] sm:$0xf]
    %v1187 = vld [vmem:[%s1176 + $0x28] sm:$0xf]
    %v1188 = vld [vmem:[%s1176 + $0x2c] sm:$0xf]
    %v1189 = vld [vmem:[%s1176 + $0x30] sm:$0xf]
    %v1190 = vld [vmem:[%s1176 + $0x34] sm:$0xf]
    %v1191 = vld [vmem:[%s1176 + $0x38] sm:$0xf]
    %v1192 = vld [vmem:[%s1176 + $0x3c] sm:$0xf]
    %v1193 = vunpack.c.l.b16 %v1137
    %v1194 = vunpack.c.l.b16 %v1147
    %v1195 = vunpack.c.l.b16 %v1165
    %v1196 = vunpack.c.l.b16 %v1175
    %v1197 = vpack.c.b16 %v1194, %v1193
    %v1198 = vpack.c.b16 %v1196, %v1195
    %v1217 = vunpack.c.l.b16 %v1177
    %v1218 = vunpack.c.l.b16 %v1178
    %v1219 = vunpack.c.l.b16 %v1179
    %v1220 = vunpack.c.l.b16 %v1180
    %v1221 = vunpack.c.l.b16 %v1181
    %v1222 = vunpack.c.l.b16 %v1182
    %v1223 = vunpack.c.l.b16 %v1183
    %v1224 = vunpack.c.l.b16 %v1184
    %v1225 = vunpack.c.l.b16 %v1185
    %v1226 = vunpack.c.l.b16 %v1186
    %v1227 = vunpack.c.l.b16 %v1187
    %v1228 = vunpack.c.l.b16 %v1188
    %v1229 = vunpack.c.l.b16 %v1189
    %v1230 = vunpack.c.l.b16 %v1190
    %v1231 = vunpack.c.l.b16 %v1191
    %v1232 = vunpack.c.l.b16 %v1192
    %v1233 = vpack.c.b16 %v1218, %v1217
    %v1234 = vpack.c.b16 %v1220, %v1219
    %v1235 = vpack.c.b16 %v1222, %v1221
    %v1236 = vpack.c.b16 %v1224, %v1223
    %v1237 = vpack.c.b16 %v1226, %v1225
    %v1238 = vpack.c.b16 %v1228, %v1227
    %v1239 = vpack.c.b16 %v1230, %v1229
    %v1240 = vpack.c.b16 %v1232, %v1231
    %1249 = vmatprep.subr.bf16.mxu0 0
    %1250 = vmatpush1.bf16.msra.mxu0 %v1240
    %1251 = vmatprep.subr.bf16.mxu0 0
    %1252 = vmatpush1.bf16.msra.mxu0 %v1239
    %1253 = vmatprep.subr.bf16.mxu0 0
    %1254 = vmatpush1.bf16.msra.mxu0 %v1238
    %1255 = vmatprep.subr.bf16.mxu0 0
    %1256 = vmatpush1.bf16.msra.mxu0 %v1237
    %1257 = vmatprep.subr.bf16.mxu0 0
    %1258 = vmatpush1.bf16.msra.mxu0 %v1236
    %1259 = vmatprep.subr.bf16.mxu0 0
    %1260 = vmatpush1.bf16.msra.mxu0 %v1235
    %1261 = vmatprep.subr.bf16.mxu0 0
    %1262 = vmatpush1.bf16.msra.mxu0 %v1234
    %1263 = vmatprep.subr.bf16.mxu0 0
    %1264 = vmatpush1.bf16.msra.mxu0 %v1233
    %1265 = vmatprep.subr.bf16.mxu0 0
    %1266 = vmatpush2.bf16.msra.mxu0 0
    %1267 = vmatprep.subr.bf16.mxu0 0
    %1268 = vmatpush2.bf16.msra.mxu0 0
    %1269 = vmatprep.subr.bf16.mxu0 0
    %1270 = vmatpush2.bf16.msra.mxu0 0
    %1271 = vmatprep.subr.bf16.mxu0 0
    %1272 = vmatpush2.bf16.msra.mxu0 0
    %1273 = vmatprep.subr.bf16.mxu0 0
    %1274 = vmatpush2.bf16.msra.mxu0 0
    %1275 = vmatprep.subr.bf16.mxu0 0
    %1276 = vmatpush2.bf16.msra.mxu0 0
    %1277 = vmatprep.subr.bf16.mxu0 0
    %1278 = vmatpush2.bf16.msra.mxu0 0
    %1279 = vmatprep.subr.bf16.mxu0 0
    %1280 = vmatpush2.bf16.msra.mxu0 0
    %1281 = vmatprep.mubr.bf16.mxu0 0
    %1282 = vmatmul.mubr.bf16.gmra.mxu0 %v1197
    %v1283 = vpop.f32.mrf.mxu0
    %v1284 = vadd.f32 0.0, %v1283
    %v1285 = vpop.f32.mrf.mxu0
    %v1286 = vpop.f32.mrf.mxu0
    %v1287 = vadd.f32 0.0, %v1286
    %v1288 = vpop.f32.mrf.mxu0
    %1289 = vmatprep.mubr.bf16.mxu0 0
    %1290 = vmatmul.mubr.bf16.gmra.mxu0 %v1198
    %v1291 = vpop.f32.mrf.mxu0
    %v1292 = vadd.f32 0.0, %v1291
    %v1293 = vpop.f32.mrf.mxu0
    %v1294 = vpop.f32.mrf.mxu0
    %v1295 = vadd.f32 0.0, %v1294
    %v1296 = vpop.f32.mrf.mxu0
    %1297 = vdwg.mxu0
    %v1298 = vadd.f32 %v1097, %v1284
    %v1299 = vadd.f32 %v1100, %v1287
    %v1300 = vadd.f32 %v1105, %v1292
    %v1301 = vadd.f32 %v1108, %v1295
    %v1302 = vld [vmem:[%s6] sm:$0x1]
    %v1304 = vlaneseq
    %v1305 = vshrl.u32 %v1304, 7
    %v1306 = vsub.s32 0, %v1305
    %v1307 = vrot.slane %v1302, %v1306
    %v1309 = vadd.f32 %v1298, %v1307
    %v1310 = vadd.f32 %v1299, %v1307
    %v1311 = vadd.f32 %v1300, %v1307
    %v1312 = vadd.f32 %v1301, %v1307
    %v1313 = vmax.f32 %v1309, 0.0
    %v1314 = vmax.f32 %v1310, 0.0
    %v1315 = vmax.f32 %v1311, 0.0
    %v1316 = vmax.f32 %v1312, 0.0
    %v1317 = vpack.c.bf16 %v1314, %v1313
    %v1318 = vpack.c.bf16 %v1316, %v1315
    %v1319 = vld [vmem:[%s7] sm:$0xf]
    %v1320 = vld [vmem:[%s7 + $0x4] sm:$0xf]
    %v1321 = vld [vmem:[%s7 + $0x8] sm:$0xf]
    %v1322 = vld [vmem:[%s7 + $0xc] sm:$0xf]
    %v1323 = vld [vmem:[%s7 + $0x10] sm:$0xf]
    %v1324 = vld [vmem:[%s7 + $0x14] sm:$0xf]
    %v1325 = vld [vmem:[%s7 + $0x18] sm:$0xf]
    %v1326 = vld [vmem:[%s7 + $0x1c] sm:$0xf]
    %v1327 = vld [vmem:[%s7 + $0x20] sm:$0xf]
    %v1328 = vld [vmem:[%s7 + $0x24] sm:$0xf]
    %v1329 = vld [vmem:[%s7 + $0x28] sm:$0xf]
    %v1330 = vld [vmem:[%s7 + $0x2c] sm:$0xf]
    %v1331 = vld [vmem:[%s7 + $0x30] sm:$0xf]
    %v1332 = vld [vmem:[%s7 + $0x34] sm:$0xf]
    %v1333 = vld [vmem:[%s7 + $0x38] sm:$0xf]
    %v1334 = vld [vmem:[%s7 + $0x3c] sm:$0xf]
    %v1335 = vld [vmem:[%s8] sm:$0x1]
    %v1337 = vlaneseq
    %v1338 = vshrl.u32 %v1337, 7
    %v1339 = vsub.s32 0, %v1338
    %v1340 = vrot.slane %v1335, %v1339
    %v1358 = vunpack.c.l.b16 %v1319
    %v1359 = vunpack.c.l.b16 %v1320
    %v1360 = vunpack.c.l.b16 %v1321
    %v1361 = vunpack.c.l.b16 %v1322
    %v1362 = vunpack.c.l.b16 %v1323
    %v1363 = vunpack.c.l.b16 %v1324
    %v1364 = vunpack.c.l.b16 %v1325
    %v1365 = vunpack.c.l.b16 %v1326
    %v1366 = vunpack.c.l.b16 %v1327
    %v1367 = vunpack.c.l.b16 %v1328
    %v1368 = vunpack.c.l.b16 %v1329
    %v1369 = vunpack.c.l.b16 %v1330
    %v1370 = vunpack.c.l.b16 %v1331
    %v1371 = vunpack.c.l.b16 %v1332
    %v1372 = vunpack.c.l.b16 %v1333
    %v1373 = vunpack.c.l.b16 %v1334
    %v1374 = vpack.c.b16 %v1359, %v1358
    %v1375 = vpack.c.b16 %v1361, %v1360
    %v1376 = vpack.c.b16 %v1363, %v1362
    %v1377 = vpack.c.b16 %v1365, %v1364
    %v1378 = vpack.c.b16 %v1367, %v1366
    %v1379 = vpack.c.b16 %v1369, %v1368
    %v1380 = vpack.c.b16 %v1371, %v1370
    %v1381 = vpack.c.b16 %v1373, %v1372
    %1390 = vmatprep.subr.bf16.mxu0 0
    %1391 = vmatpush1.bf16.msra.mxu0 %v1381
    %1392 = vmatprep.subr.bf16.mxu0 0
    %1393 = vmatpush1.bf16.msra.mxu0 %v1380
    %1394 = vmatprep.subr.bf16.mxu0 0
    %1395 = vmatpush1.bf16.msra.mxu0 %v1379
    %1396 = vmatprep.subr.bf16.mxu0 0
    %1397 = vmatpush1.bf16.msra.mxu0 %v1378
    %1398 = vmatprep.subr.bf16.mxu0 0
    %1399 = vmatpush1.bf16.msra.mxu0 %v1377
    %1400 = vmatprep.subr.bf16.mxu0 0
    %1401 = vmatpush1.bf16.msra.mxu0 %v1376
    %1402 = vmatprep.subr.bf16.mxu0 0
    %1403 = vmatpush1.bf16.msra.mxu0 %v1375
    %1404 = vmatprep.subr.bf16.mxu0 0
    %1405 = vmatpush1.bf16.msra.mxu0 %v1374
    %1406 = vmatprep.subr.bf16.mxu0 0
    %1407 = vmatpush2.bf16.msra.mxu0 0
    %1408 = vmatprep.subr.bf16.mxu0 0
    %1409 = vmatpush2.bf16.msra.mxu0 0
    %1410 = vmatprep.subr.bf16.mxu0 0
    %1411 = vmatpush2.bf16.msra.mxu0 0
    %1412 = vmatprep.subr.bf16.mxu0 0
    %1413 = vmatpush2.bf16.msra.mxu0 0
    %1414 = vmatprep.subr.bf16.mxu0 0
    %1415 = vmatpush2.bf16.msra.mxu0 0
    %1416 = vmatprep.subr.bf16.mxu0 0
    %1417 = vmatpush2.bf16.msra.mxu0 0
    %1418 = vmatprep.subr.bf16.mxu0 0
    %1419 = vmatpush2.bf16.msra.mxu0 0
    %1420 = vmatprep.subr.bf16.mxu0 0
    %1421 = vmatpush2.bf16.msra.mxu0 0
    %1422 = vmatprep.mubr.bf16.mxu0 0
    %1423 = vmatmul.mubr.bf16.gmra.mxu0 %v1317
    %v1424 = vpop.f32.mrf.mxu0
    %v1425 = vadd.f32 %v1340, %v1424
    %v1426 = vpop.f32.mrf.mxu0
    %v1427 = vpop.f32.mrf.mxu0
    %v1428 = vadd.f32 %v1340, %v1427
    %v1429 = vpop.f32.mrf.mxu0
    %1430 = vmatprep.mubr.bf16.mxu0 0
    %1431 = vmatmul.mubr.bf16.gmra.mxu0 %v1318
    %v1432 = vpop.f32.mrf.mxu0
    %v1433 = vadd.f32 %v1340, %v1432
    %v1434 = vpop.f32.mrf.mxu0
    %v1435 = vpop.f32.mrf.mxu0
    %v1436 = vadd.f32 %v1340, %v1435
    %v1437 = vpop.f32.mrf.mxu0
    %1438 = vdwg.mxu0
    %v1439 = vmax.f32 %v1425, 0.0
    %v1440 = vmax.f32 %v1428, 0.0
    %v1441 = vmax.f32 %v1433, 0.0
    %v1442 = vmax.f32 %v1436, 0.0
    %v1443 = vpack.c.bf16 %v1440, %v1439
    %v1444 = vpack.c.bf16 %v1442, %v1441
    %v1445 = vld [vmem:[%s9] sm:$0xf]
    %v1446 = vld [vmem:[%s9 + $0x4] sm:$0xf]
    %v1447 = vld [vmem:[%s9 + $0x8] sm:$0xf]
    %v1448 = vld [vmem:[%s9 + $0xc] sm:$0xf]
    %v1449 = vld [vmem:[%s9 + $0x10] sm:$0xf]
    %v1450 = vld [vmem:[%s9 + $0x14] sm:$0xf]
    %v1451 = vld [vmem:[%s9 + $0x18] sm:$0xf]
    %v1452 = vld [vmem:[%s9 + $0x1c] sm:$0xf]
    %v1453 = vld [vmem:[%s9 + $0x20] sm:$0xf]
    %v1454 = vld [vmem:[%s9 + $0x24] sm:$0xf]
    %v1455 = vld [vmem:[%s9 + $0x28] sm:$0xf]
    %v1456 = vld [vmem:[%s9 + $0x2c] sm:$0xf]
    %v1457 = vld [vmem:[%s9 + $0x30] sm:$0xf]
    %v1458 = vld [vmem:[%s9 + $0x34] sm:$0xf]
    %v1459 = vld [vmem:[%s9 + $0x38] sm:$0xf]
    %v1460 = vld [vmem:[%s9 + $0x3c] sm:$0xf]
    %v1461 = vld [vmem:[%s10] sm:$0x1]
    %v1463 = vlaneseq
    %v1464 = vshrl.u32 %v1463, 7
    %v1465 = vsub.s32 0, %v1464
    %v1466 = vrot.slane %v1461, %v1465
    %v1484 = vunpack.c.l.b16 %v1445
    %v1485 = vunpack.c.l.b16 %v1446
    %v1486 = vunpack.c.l.b16 %v1447
    %v1487 = vunpack.c.l.b16 %v1448
    %v1488 = vunpack.c.l.b16 %v1449
    %v1489 = vunpack.c.l.b16 %v1450
    %v1490 = vunpack.c.l.b16 %v1451
    %v1491 = vunpack.c.l.b16 %v1452
    %v1492 = vunpack.c.l.b16 %v1453
    %v1493 = vunpack.c.l.b16 %v1454
    %v1494 = vunpack.c.l.b16 %v1455
    %v1495 = vunpack.c.l.b16 %v1456
    %v1496 = vunpack.c.l.b16 %v1457
    %v1497 = vunpack.c.l.b16 %v1458
    %v1498 = vunpack.c.l.b16 %v1459
    %v1499 = vunpack.c.l.b16 %v1460
    %v1500 = vpack.c.b16 %v1485, %v1484
    %v1501 = vpack.c.b16 %v1487, %v1486
    %v1502 = vpack.c.b16 %v1489, %v1488
    %v1503 = vpack.c.b16 %v1491, %v1490
    %v1504 = vpack.c.b16 %v1493, %v1492
    %v1505 = vpack.c.b16 %v1495, %v1494
    %v1506 = vpack.c.b16 %v1497, %v1496
    %v1507 = vpack.c.b16 %v1499, %v1498
    %1516 = vmatprep.subr.bf16.mxu0 0
    %1517 = vmatpush1.bf16.msra.mxu0 %v1507
    %1518 = vmatprep.subr.bf16.mxu0 0
    %1519 = vmatpush1.bf16.msra.mxu0 %v1506
    %1520 = vmatprep.subr.bf16.mxu0 0
    %1521 = vmatpush1.bf16.msra.mxu0 %v1505
    %1522 = vmatprep.subr.bf16.mxu0 0
    %1523 = vmatpush1.bf16.msra.mxu0 %v1504
    %1524 = vmatprep.subr.bf16.mxu0 0
    %1525 = vmatpush1.bf16.msra.mxu0 %v1503
    %1526 = vmatprep.subr.bf16.mxu0 0
    %1527 = vmatpush1.bf16.msra.mxu0 %v1502
    %1528 = vmatprep.subr.bf16.mxu0 0
    %1529 = vmatpush1.bf16.msra.mxu0 %v1501
    %1530 = vmatprep.subr.bf16.mxu0 0
    %1531 = vmatpush1.bf16.msra.mxu0 %v1500
    %1532 = vmatprep.subr.bf16.mxu0 0
    %1533 = vmatpush2.bf16.msra.mxu0 0
    %1534 = vmatprep.subr.bf16.mxu0 0
    %1535 = vmatpush2.bf16.msra.mxu0 0
    %1536 = vmatprep.subr.bf16.mxu0 0
    %1537 = vmatpush2.bf16.msra.mxu0 0
    %1538 = vmatprep.subr.bf16.mxu0 0
    %1539 = vmatpush2.bf16.msra.mxu0 0
    %1540 = vmatprep.subr.bf16.mxu0 0
    %1541 = vmatpush2.bf16.msra.mxu0 0
    %1542 = vmatprep.subr.bf16.mxu0 0
    %1543 = vmatpush2.bf16.msra.mxu0 0
    %1544 = vmatprep.subr.bf16.mxu0 0
    %1545 = vmatpush2.bf16.msra.mxu0 0
    %1546 = vmatprep.subr.bf16.mxu0 0
    %1547 = vmatpush2.bf16.msra.mxu0 0
    %1548 = vmatprep.mubr.bf16.mxu0 0
    %1549 = vmatmul.mubr.bf16.gmra.mxu0 %v1443
    %v1550 = vpop.f32.mrf.mxu0
    %v1551 = vadd.f32 %v1466, %v1550
    %v1552 = vpop.f32.mrf.mxu0
    %v1553 = vpop.f32.mrf.mxu0
    %v1554 = vadd.f32 %v1466, %v1553
    %v1555 = vpop.f32.mrf.mxu0
    %1556 = vmatprep.mubr.bf16.mxu0 0
    %1557 = vmatmul.mubr.bf16.gmra.mxu0 %v1444
    %v1558 = vpop.f32.mrf.mxu0
    %v1559 = vadd.f32 %v1466, %v1558
    %v1560 = vpop.f32.mrf.mxu0
    %v1561 = vpop.f32.mrf.mxu0
    %v1562 = vadd.f32 %v1466, %v1561
    %v1563 = vpop.f32.mrf.mxu0
    %1564 = vdwg.mxu0
    %vm1565 = vcmask 261120
    %1566 = vst.msk [vmem:[#allocation11] sm:$0xff] %vm1565, %v1551
    %1567 = vst.msk [vmem:[#allocation11 + $0x8] sm:$0xff] %vm1565, %v1554
    %1568 = vst.msk [vmem:[#allocation11 + $0x10] sm:$0xff] %vm1565, %v1559
    %1569 = vst.msk [vmem:[#allocation11 + $0x18] sm:$0xff] %vm1565, %v1562
    // Predicated region
    $region62: #{tpu_custom_call.1} parent=1 // pred_check
      _
    $region63: #{tpu_custom_call.1} parent=1 // pred_check_branch
      %1571 = sbr.rel (0) target = $region65
    $region64: #{tpu_custom_call.1} parent=1 // pred_region
      %s1573 = ssub.s32 512, 512
      %1574 = vsyncadd [#allocation5], %s1573
      %s1575 = sshll.u32 [#allocation11], 4
      %s1576 = int_to_ptr.vmem [resolvable:$true] %s1575
      %1581 = dma.vmem_to_hbm [thread:$0]  %s1576, 512, %s11, [#allocation5], 128, 128, 8
    $region65: #{tpu_custom_call.1} parent=1 // pred_fallthru
      _
    // Predicated region
    $region66: #{tpu_custom_call.1} parent=1 // pred_check
      _
    $region67: #{tpu_custom_call.1} parent=1 // pred_check_branch
      %1583 = sbr.rel (0) target = $region69
    $region68: #{tpu_custom_call.1} parent=1 // pred_region
      %1584 = dma.done [#allocation5], 512
    $region69: #{tpu_custom_call.1} parent=1 // pred_fallthru
      _
    %1585 = vsyncpa [#allocation4], 1
    %1586 = vsyncpa [#allocation7], 1
    %1587 = vsyncpa [#allocation10], 1
    %1588 = vsyncpa [#allocation5], 1

</llo_original>
